<compile_context>
chip_gen: v6e
topology: v6e:2x2x1
jax: 0.10.0
libtpu: 0.0.40
codegen_flags: <defaults>
</compile_context>

<pallas_src>
import functools

import jax
import jax.numpy as jnp
from jax import lax
from jax.experimental import pallas as pl
from jax.experimental.pallas import tpu as pltpu


def _round_up(x, m):
    return ((x + m - 1) // m) * m


def _conv_block_kernel(x_ref, w_ref, p_ref, o_ref, patch_ref, *, D, H, W, Cin, KP2):
    # x_ref    : (1, D, H, W*Cin)   f32   one sample, W & Cin folded in lanes
    # w_ref    : (KP2, W*Cout)      bf16  block-Toeplitz im2col weight
    # p_ref    : (W*Cout, W*Cout)   f32   0/1 "same output channel" matrix
    # o_ref    : (1, D*H, W*Cout)   f32   fused conv+norm+act output (unpadded)
    # patch_ref: (D, H, KP2)        f32   VMEM scratch, strip-im2col patch
    Wc = W * Cin                 # lane width of one input row
    Wc2 = (W + 2) * Cin          # lane width of one W-haloed patch strip
    DH = D * H
    M = DH * W                   # voxels per sample (InstanceNorm population)

    # Zero the patch: covers the W-halo columns, the z/y halo rows of every
    # strip and the KP2-K2 pad columns (these must stay zero -- garbage bits
    # reinterpreted as bf16 could be NaN/Inf and poison the MXU accumulation).
    patch_ref[...] = jnp.zeros(patch_ref.shape, patch_ref.dtype)

    # 9 wide strip copies: for each (kd, kh) the valid (z, y) window of the
    # input is copied as one contiguous (zl, yl, W*Cin) block into lanes
    # [j*Wc2 + Cin, j*Wc2 + Cin + Wc) of the patch.  The 3 kw taps are handled
    # by the block-Toeplitz weight, so there are no narrow per-tap stores and
    # no (x -> sublane) relayouts.  All slice bounds are static.
    for kd in range(3):
        z0 = max(0, 1 - kd)
        zl = min(D, D + 1 - kd) - z0
        for kh in range(3):
            y0 = max(0, 1 - kh)
            yl = min(H, H + 1 - kh) - y0
            j = kd * 3 + kh
            src = x_ref[0, pl.ds(z0 + kd - 1, zl), pl.ds(y0 + kh - 1, yl), :]
            patch_ref[pl.ds(z0, zl), pl.ds(y0, yl), pl.ds(j * Wc2 + Cin, Wc)] = src

    # Single MXU matmul: bf16 inputs, f32 accumulation.
    patch = patch_ref[...].reshape(DH, KP2).astype(jnp.bfloat16)
    y = jnp.dot(patch, w_ref[...], preferred_element_type=jnp.float32)  # (DH, W*Cout)

    # Conv bias is intentionally omitted: InstanceNorm's mean subtraction
    # cancels a per-channel bias exactly, so adding it would be wasted work.

    # InstanceNorm3d (affine=False, eps=1e-5, biased variance), one traversal:
    # per-channel sums over (z, y) via a sublane reduction and over the x lane
    # groups via a tiny 0/1 matmul which also broadcasts the per-channel result
    # back to the (x, cout) column layout.
    inv_m = 1.0 / M
    sum_b = jnp.sum(jnp.dot(y, p_ref[...], preferred_element_type=jnp.float32),
                    axis=0, keepdims=True)                      # (1, W*Cout)
    sq_b = jnp.sum(jnp.dot(y * y, p_ref[...], preferred_element_type=jnp.float32),
                   axis=0, keepdims=True)                       # (1, W*Cout)
    mean_b = sum_b * inv_m
    var_b = sq_b * inv_m - mean_b * mean_b
    y = (y - mean_b) * lax.rsqrt(var_b + 1e-5)

    # LeakyReLU, negative_slope = 0.01.
    y = jnp.where(y >= 0.0, y, 0.01 * y)

    # TODO(synk): Dropout3d(p=0.1) is identity (eval-mode semantics); training
    # mode would need a per-(sample, channel) Bernoulli mask scaled by 1/(1-p)
    # via pltpu.prng_seed / pltpu.prng_random_bits.
    o_ref[0] = y.astype(o_ref.dtype)


def conv_block_forward(x_ncdhw, weight, bias=None):
    """ConvBlock forward.

    x_ncdhw: (N, Cin, D, H, W) f32; weight: (Cout, Cin, 3, 3, 3) f32;
    bias: (Cout,) accepted for API fidelity but unused (InstanceNorm cancels it
    exactly).  Returns (N, Cout, D, H, W) f32.
    """
    del bias  # exactly cancelled by InstanceNorm's mean subtraction
    N, Cin, D, H, W = x_ncdhw.shape
    Cout = weight.shape[0]
    Wc = W * Cin
    Wc2 = (W + 2) * Cin
    DH = D * H
    WCo = W * Cout
    K2 = 9 * Wc2
    KP2 = _round_up(K2, 128)

    # NCDHW -> (N, D, H, W*Cin): channels folded next to W in the lane dim.
    # TODO(synk): if the surrounding network keeps activations in this layout,
    # this transpose and the final one disappear entirely.
    x = jnp.transpose(x_ncdhw, (0, 2, 3, 4, 1)).reshape(N, D, H, Wc)

    # Block-Toeplitz im2col weight:
    #   w2[(kd*3+kh)*Wc2 + w_in*Cin + ci, x*Cout + co]
    #       = weight[co, ci, kd, kh, w_in - x]   if 0 <= w_in - x <= 2 else 0
    w_t = jnp.transpose(weight, (2, 3, 4, 1, 0)).reshape(9, 3, Cin, Cout)
    w_in = jnp.arange(W + 2)[:, None]
    xs = jnp.arange(W)[None, :]
    kw = w_in - xs                                        # (W+2, W)
    valid = ((kw >= 0) & (kw <= 2)).astype(weight.dtype)
    t = w_t[:, jnp.clip(kw, 0, 2)]                        # (9, W+2, W, Cin, Cout)
    t = t * valid[None, :, :, None, None]
    t = jnp.transpose(t, (0, 1, 3, 2, 4))                 # (9, W+2, Cin, W, Cout)
    w2 = t.reshape(K2, WCo)
    w2 = jnp.pad(w2, ((0, KP2 - K2), (0, 0))).astype(jnp.bfloat16)

    # 0/1 matrix: p[a, b] = 1 iff columns a and b belong to the same out channel.
    ch = jnp.arange(WCo) % Cout
    p = (ch[:, None] == ch[None, :]).astype(jnp.float32)

    kernel = functools.partial(_conv_block_kernel, D=D, H=H, W=W, Cin=Cin, KP2=KP2)

    flops = 2 * N * DH * KP2 * WCo + 4 * N * DH * WCo * WCo
    bytes_accessed = (x.size + p.size + N * DH * WCo) * 4 + w2.size * 2
    cost = pl.CostEstimate(flops=flops, transcendentals=N * WCo,
                           bytes_accessed=bytes_accessed)

    # VMEM budget derived from the actual (lane-padded, double-buffered) blocks.
    lane = 128
    vmem_bytes = (
        2 * D * H * _round_up(Wc, lane) * 4                   # x block
        + 2 * KP2 * _round_up(WCo, lane) * 2                  # w2
        + 2 * _round_up(WCo, 8) * _round_up(WCo, lane) * 4    # p
        + 2 * DH * _round_up(WCo, lane) * 4                   # output block
        + D * H * KP2 * 4                                     # patch scratch
    )
    vmem_limit = int(min(2 * vmem_bytes + (4 << 20), 64 << 20))

    out = pl.pallas_call(
        kernel,
        out_shape=jax.ShapeDtypeStruct((N, DH, WCo), jnp.float32),
        grid_spec=pltpu.PrefetchScalarGridSpec(
            num_scalar_prefetch=0,
            grid=(N,),
            in_specs=[
                pl.BlockSpec((1, D, H, Wc), lambda n: (n, 0, 0, 0)),
                pl.BlockSpec((KP2, WCo), lambda n: (0, 0)),
                pl.BlockSpec((WCo, WCo), lambda n: (0, 0)),
            ],
            out_specs=pl.BlockSpec((1, DH, WCo), lambda n: (n, 0, 0)),
            scratch_shapes=[pltpu.VMEM((D, H, KP2), jnp.float32)],
        ),
        compiler_params=pltpu.CompilerParams(
            dimension_semantics=("parallel",),
            vmem_limit_bytes=vmem_limit,
        ),
        cost_estimate=cost,
    )(x, w2, p)

    # (N, D*H, W*Cout) -> (N, Cout, D, H, W): tiny unpadded tensor.
    out = out.reshape(N, D, H, W, Cout)
    return jnp.transpose(out, (0, 4, 1, 2, 3))


if __name__ == "__main__":
    key = jax.random.PRNGKey(0)
    k_x, k_w, k_b = jax.random.split(key, 3)

    N, Cin, Cout = 2, 4, 8
    D = H = W = 8

    x = jax.random.normal(k_x, (N, Cin, D, H, W), dtype=jnp.float32)

    # Deterministic parameter init (mimics Conv3d uniform(-1/sqrt(fan_in), .)).
    fan_in = Cin * 3 * 3 * 3
    bound = 1.0 / (fan_in ** 0.5)
    weight = jax.random.uniform(k_w, (Cout, Cin, 3, 3, 3),
                                minval=-bound, maxval=bound, dtype=jnp.float32)
    bias = jax.random.uniform(k_b, (Cout,),
                              minval=-bound, maxval=bound, dtype=jnp.float32)

    out = conv_block_forward(x, weight, bias)
    jax.block_until_ready(out)

    assert out.shape == (N, Cout, D, H, W), out.shape
    assert bool(jnp.all(jnp.isfinite(out)))

    # Cross-check against a pure-XLA reference (loose tol: bf16 MXU inputs).
    conv = lax.conv_general_dilated(
        x, weight, window_strides=(1, 1, 1), padding=[(1, 1)] * 3,
        dimension_numbers=("NCDHW", "OIDHW", "NCDHW"))
    conv = conv + bias.reshape(1, Cout, 1, 1, 1)
    mean = jnp.mean(conv, axis=(2, 3, 4), keepdims=True)
    var = jnp.mean((conv - mean) ** 2, axis=(2, 3, 4), keepdims=True)
    ref = (conv - mean) * lax.rsqrt(var + 1e-5)
    ref = jnp.where(ref >= 0.0, ref, 0.01 * ref)
    err = float(jnp.max(jnp.abs(out - ref)))
    assert err < 1e-1, err

    print("KERNEL_OK")
</pallas_src>

<mosaic_0001>
module attributes {stable_mosaic.version = 11 : i64} {
  func.func @_conv_block_kernel(%arg0: i32, %arg1: memref<1x8x8x32xf32, #tpu.memory_space<vmem>>, %arg2: memref<384x64xbf16, #tpu.memory_space<vmem>>, %arg3: memref<64x64xf32, #tpu.memory_space<vmem>>, %arg4: memref<1x64x64xf32, #tpu.memory_space<vmem>>, %arg5: memref<8x8x384xf32, #tpu.memory_space<vmem>>) attributes {dimension_semantics = [#tpu.dimension_semantics<parallel>], iteration_bounds = array<i64: 2>, scalar_prefetch = 0 : i64, scratch_operands = 1 : i64, tpu.core_type = #tpu.core_type<tc>, window_params = [{transform_indices = @transform_0, window_bounds = array<i64: 1, 8, 8, 32>}, {pipeline_mode = #tpu.pipeline_mode<synchronous>, transform_indices = @transform_1, window_bounds = array<i64: 384, 64>}, {pipeline_mode = #tpu.pipeline_mode<synchronous>, transform_indices = @transform_2, window_bounds = array<i64: 64, 64>}, {transform_indices = @transform_3, window_bounds = array<i64: 1, 64, 64>}]} {
    %cst = arith.constant 0.000000e+00 : f32
    %0 = vector.broadcast %cst : f32 to vector<8x8x384xf32>
    %c0 = arith.constant 0 : index
    %c0_0 = arith.constant 0 : index
    %c0_1 = arith.constant 0 : index
    %1 = vector.load %arg5[%c0, %c0_0, %c0_1] : memref<8x8x384xf32, #tpu.memory_space<vmem>>, vector<8x8x384xf32>
    tpu.vector_store %arg5[%c0, %c0_0, %c0_1], %0 {strides = array<i32>} : memref<8x8x384xf32, #tpu.memory_space<vmem>>, vector<8x8x384xf32>,
    %c0_2 = arith.constant 0 : index
    %c0_3 = arith.constant 0 : index
    %c0_4 = arith.constant 0 : index
    %c0_5 = arith.constant 0 : index
    %2 = vector.load %arg1[%c0_2, %c0_3, %c0_4, %c0_5] : memref<1x8x8x32xf32, #tpu.memory_space<vmem>>, vector<1x7x7x32xf32>
    %3 = vector.shape_cast %2 : vector<1x7x7x32xf32> to vector<7x7x32xf32>
    %c1 = arith.constant 1 : index
    %c1_6 = arith.constant 1 : index
    %c4 = arith.constant 4 : index
    %4 = vector.load %arg5[%c1, %c1_6, %c4] : memref<8x8x384xf32, #tpu.memory_space<vmem>>, vector<7x7x32xf32>
    tpu.vector_store %arg5[%c1, %c1_6, %c4], %3 {strides = array<i32>} : memref<8x8x384xf32, #tpu.memory_space<vmem>>, vector<7x7x32xf32>,
    %c0_7 = arith.constant 0 : index
    %c0_8 = arith.constant 0 : index
    %c0_9 = arith.constant 0 : index
    %c0_10 = arith.constant 0 : index
    %5 = vector.load %arg1[%c0_7, %c0_8, %c0_9, %c0_10] : memref<1x8x8x32xf32, #tpu.memory_space<vmem>>, vector<1x7x8x32xf32>
    %6 = vector.shape_cast %5 : vector<1x7x8x32xf32> to vector<7x8x32xf32>
    %c1_11 = arith.constant 1 : index
    %c0_12 = arith.constant 0 : index
    %c44 = arith.constant 44 : index
    %7 = vector.load %arg5[%c1_11, %c0_12, %c44] : memref<8x8x384xf32, #tpu.memory_space<vmem>>, vector<7x8x32xf32>
    tpu.vector_store %arg5[%c1_11, %c0_12, %c44], %6 {strides = array<i32>} : memref<8x8x384xf32, #tpu.memory_space<vmem>>, vector<7x8x32xf32>,
    %c0_13 = arith.constant 0 : index
    %c0_14 = arith.constant 0 : index
    %c1_15 = arith.constant 1 : index
    %c0_16 = arith.constant 0 : index
    %8 = vector.load %arg1[%c0_13, %c0_14, %c1_15, %c0_16] : memref<1x8x8x32xf32, #tpu.memory_space<vmem>>, vector<1x7x7x32xf32>
    %9 = vector.shape_cast %8 : vector<1x7x7x32xf32> to vector<7x7x32xf32>
    %c1_17 = arith.constant 1 : index
    %c0_18 = arith.constant 0 : index
    %c84 = arith.constant 84 : index
    %10 = vector.load %arg5[%c1_17, %c0_18, %c84] : memref<8x8x384xf32, #tpu.memory_space<vmem>>, vector<7x7x32xf32>
    tpu.vector_store %arg5[%c1_17, %c0_18, %c84], %9 {strides = array<i32>} : memref<8x8x384xf32, #tpu.memory_space<vmem>>, vector<7x7x32xf32>,
    %c0_19 = arith.constant 0 : index
    %c0_20 = arith.constant 0 : index
    %c0_21 = arith.constant 0 : index
    %c0_22 = arith.constant 0 : index
    %11 = vector.load %arg1[%c0_19, %c0_20, %c0_21, %c0_22] : memref<1x8x8x32xf32, #tpu.memory_space<vmem>>, vector<1x8x7x32xf32>
    %12 = vector.shape_cast %11 : vector<1x8x7x32xf32> to vector<8x7x32xf32>
    %c0_23 = arith.constant 0 : index
    %c1_24 = arith.constant 1 : index
    %c124 = arith.constant 124 : index
    %13 = vector.load %arg5[%c0_23, %c1_24, %c124] : memref<8x8x384xf32, #tpu.memory_space<vmem>>, vector<8x7x32xf32>
    tpu.vector_store %arg5[%c0_23, %c1_24, %c124], %12 {strides = array<i32>} : memref<8x8x384xf32, #tpu.memory_space<vmem>>, vector<8x7x32xf32>,
    %c0_25 = arith.constant 0 : index
    %c0_26 = arith.constant 0 : index
    %c0_27 = arith.constant 0 : index
    %c0_28 = arith.constant 0 : index
    %14 = vector.load %arg1[%c0_25, %c0_26, %c0_27, %c0_28] : memref<1x8x8x32xf32, #tpu.memory_space<vmem>>, vector<1x8x8x32xf32>
    %15 = vector.shape_cast %14 : vector<1x8x8x32xf32> to vector<8x8x32xf32>
    %c0_29 = arith.constant 0 : index
    %c0_30 = arith.constant 0 : index
    %c164 = arith.constant 164 : index
    %16 = vector.load %arg5[%c0_29, %c0_30, %c164] : memref<8x8x384xf32, #tpu.memory_space<vmem>>, vector<8x8x32xf32>
    tpu.vector_store %arg5[%c0_29, %c0_30, %c164], %15 {strides = array<i32>} : memref<8x8x384xf32, #tpu.memory_space<vmem>>, vector<8x8x32xf32>,
    %c0_31 = arith.constant 0 : index
    %c0_32 = arith.constant 0 : index
    %c1_33 = arith.constant 1 : index
    %c0_34 = arith.constant 0 : index
    %17 = vector.load %arg1[%c0_31, %c0_32, %c1_33, %c0_34] : memref<1x8x8x32xf32, #tpu.memory_space<vmem>>, vector<1x8x7x32xf32>
    %18 = vector.shape_cast %17 : vector<1x8x7x32xf32> to vector<8x7x32xf32>
    %c0_35 = arith.constant 0 : index
    %c0_36 = arith.constant 0 : index
    %c204 = arith.constant 204 : index
    %19 = vector.load %arg5[%c0_35, %c0_36, %c204] : memref<8x8x384xf32, #tpu.memory_space<vmem>>, vector<8x7x32xf32>
    tpu.vector_store %arg5[%c0_35, %c0_36, %c204], %18 {strides = array<i32>} : memref<8x8x384xf32, #tpu.memory_space<vmem>>, vector<8x7x32xf32>,
    %c0_37 = arith.constant 0 : index
    %c1_38 = arith.constant 1 : index
    %c0_39 = arith.constant 0 : index
    %c0_40 = arith.constant 0 : index
    %20 = vector.load %arg1[%c0_37, %c1_38, %c0_39, %c0_40] : memref<1x8x8x32xf32, #tpu.memory_space<vmem>>, vector<1x7x7x32xf32>
    %21 = vector.shape_cast %20 : vector<1x7x7x32xf32> to vector<7x7x32xf32>
    %c0_41 = arith.constant 0 : index
    %c1_42 = arith.constant 1 : index
    %c244 = arith.constant 244 : index
    %22 = vector.load %arg5[%c0_41, %c1_42, %c244] : memref<8x8x384xf32, #tpu.memory_space<vmem>>, vector<7x7x32xf32>
    tpu.vector_store %arg5[%c0_41, %c1_42, %c244], %21 {strides = array<i32>} : memref<8x8x384xf32, #tpu.memory_space<vmem>>, vector<7x7x32xf32>,
    %c0_43 = arith.constant 0 : index
    %c1_44 = arith.constant 1 : index
    %c0_45 = arith.constant 0 : index
    %c0_46 = arith.constant 0 : index
    %23 = vector.load %arg1[%c0_43, %c1_44, %c0_45, %c0_46] : memref<1x8x8x32xf32, #tpu.memory_space<vmem>>, vector<1x7x8x32xf32>
    %24 = vector.shape_cast %23 : vector<1x7x8x32xf32> to vector<7x8x32xf32>
    %c0_47 = arith.constant 0 : index
    %c0_48 = arith.constant 0 : index
    %c284 = arith.constant 284 : index
    %25 = vector.load %arg5[%c0_47, %c0_48, %c284] : memref<8x8x384xf32, #tpu.memory_space<vmem>>, vector<7x8x32xf32>
    tpu.vector_store %arg5[%c0_47, %c0_48, %c284], %24 {strides = array<i32>} : memref<8x8x384xf32, #tpu.memory_space<vmem>>, vector<7x8x32xf32>,
    %c0_49 = arith.constant 0 : index
    %c1_50 = arith.constant 1 : index
    %c1_51 = arith.constant 1 : index
    %c0_52 = arith.constant 0 : index
    %26 = vector.load %arg1[%c0_49, %c1_50, %c1_51, %c0_52] : memref<1x8x8x32xf32, #tpu.memory_space<vmem>>, vector<1x7x7x32xf32>
    %27 = vector.shape_cast %26 : vector<1x7x7x32xf32> to vector<7x7x32xf32>
    %c0_53 = arith.constant 0 : index
    %c0_54 = arith.constant 0 : index
    %c324 = arith.constant 324 : index
    %28 = vector.load %arg5[%c0_53, %c0_54, %c324] : memref<8x8x384xf32, #tpu.memory_space<vmem>>, vector<7x7x32xf32>
    tpu.vector_store %arg5[%c0_53, %c0_54, %c324], %27 {strides = array<i32>} : memref<8x8x384xf32, #tpu.memory_space<vmem>>, vector<7x7x32xf32>,
    %c0_55 = arith.constant 0 : index
    %c0_56 = arith.constant 0 : index
    %c0_57 = arith.constant 0 : index
    %29 = vector.load %arg5[%c0_55, %c0_56, %c0_57] : memref<8x8x384xf32, #tpu.memory_space<vmem>>, vector<8x8x384xf32>
    %30 = vector.shape_cast %29 : vector<8x8x384xf32> to vector<64x384xf32>
    %31 = arith.truncf %30 : vector<64x384xf32> to vector<64x384xbf16>
    %c0_58 = arith.constant 0 : index
    %c0_59 = arith.constant 0 : index
    %32 = vector.load %arg2[%c0_58, %c0_59] : memref<384x64xbf16, #tpu.memory_space<vmem>>, vector<384x64xbf16>
    %cst_60 = arith.constant dense<0.000000e+00> : vector<64x64xf32>
    %33 = tpu.matmul %31, %32, %cst_60 {dimension_numbers = #tpu.dot_dimension_numbers<[1], [0], [0], [1], [0, 0, 1, 1], [], []>} : vector<64x384xbf16>, vector<384x64xbf16>, vector<64x64xf32> -> vector<64x64xf32>
    %c0_61 = arith.constant 0 : index
    %c0_62 = arith.constant 0 : index
    %34 = vector.load %arg3[%c0_61, %c0_62] : memref<64x64xf32, #tpu.memory_space<vmem>>, vector<64x64xf32>
    %cst_63 = arith.constant dense<0.000000e+00> : vector<64x64xf32>
    %35 = tpu.matmul %33, %34, %cst_63 {dimension_numbers = #tpu.dot_dimension_numbers<[1], [0], [0], [1], [0, 0, 1, 1], [], []>} : vector<64x64xf32>, vector<64x64xf32>, vector<64x64xf32> -> vector<64x64xf32>
    %cst_64 = arith.constant dense<0.000000e+00> : vector<64xf32>
    %36 = vector.multi_reduction <add>, %35, %cst_64 [0] : vector<64x64xf32> to vector<64xf32>
    %37 = vector.shape_cast %36 : vector<64xf32> to vector<1x64xf32>
    %38 = arith.mulf %33, %33 : vector<64x64xf32>
    %c0_65 = arith.constant 0 : index
    %c0_66 = arith.constant 0 : index
    %39 = vector.load %arg3[%c0_65, %c0_66] : memref<64x64xf32, #tpu.memory_space<vmem>>, vector<64x64xf32>
    %cst_67 = arith.constant dense<0.000000e+00> : vector<64x64xf32>
    %40 = tpu.matmul %38, %39, %cst_67 {dimension_numbers = #tpu.dot_dimension_numbers<[1], [0], [0], [1], [0, 0, 1, 1], [], []>} : vector<64x64xf32>, vector<64x64xf32>, vector<64x64xf32> -> vector<64x64xf32>
    %cst_68 = arith.constant dense<0.000000e+00> : vector<64xf32>
    %41 = vector.multi_reduction <add>, %40, %cst_68 [0] : vector<64x64xf32> to vector<64xf32>
    %42 = vector.shape_cast %41 : vector<64xf32> to vector<1x64xf32>
    %cst_69 = arith.constant 0.001953125 : f32
    %43 = vector.broadcast %cst_69 : f32 to vector<1x64xf32>
    %44 = arith.mulf %37, %43 : vector<1x64xf32>
    %cst_70 = arith.constant 0.001953125 : f32
    %45 = vector.broadcast %cst_70 : f32 to vector<1x64xf32>
    %46 = arith.mulf %42, %45 : vector<1x64xf32>
    %47 = arith.mulf %44, %44 : vector<1x64xf32>
    %48 = arith.subf %46, %47 : vector<1x64xf32>
    %49 = vector.broadcast %44 : vector<1x64xf32> to vector<64x64xf32>
    %50 = arith.subf %33, %49 : vector<64x64xf32>
    %cst_71 = arith.constant 9.99999974E-6 : f32
    %51 = vector.broadcast %cst_71 : f32 to vector<1x64xf32>
    %52 = arith.addf %48, %51 : vector<1x64xf32>
    %53 = math.rsqrt %52 : vector<1x64xf32>
    %54 = vector.broadcast %53 : vector<1x64xf32> to vector<64x64xf32>
    %55 = arith.mulf %50, %54 : vector<64x64xf32>
    %cst_72 = arith.constant 0.000000e+00 : f32
    %56 = vector.broadcast %cst_72 : f32 to vector<64x64xf32>
    %57 = arith.cmpf oge, %55, %56 : vector<64x64xf32>
    %cst_73 = arith.constant 0.00999999977 : f32
    %58 = vector.broadcast %cst_73 : f32 to vector<64x64xf32>
    %59 = arith.mulf %58, %55 : vector<64x64xf32>
    %60 = arith.select %57, %55, %59 : vector<64x64xi1>, vector<64x64xf32>
    %c0_74 = arith.constant 0 : index
    %c0_75 = arith.constant 0 : index
    %c0_76 = arith.constant 0 : index
    %61 = vector.load %arg4[%c0_74, %c0_75, %c0_76] : memref<1x64x64xf32, #tpu.memory_space<vmem>>, vector<1x64x64xf32>
    %62 = vector.shape_cast %61 : vector<1x64x64xf32> to vector<64x64xf32>
    %63 = vector.shape_cast %60 : vector<64x64xf32> to vector<1x64x64xf32>
    tpu.vector_store %arg4[%c0_74, %c0_75, %c0_76], %63 {strides = array<i32>} : memref<1x64x64xf32, #tpu.memory_space<vmem>>, vector<1x64x64xf32>,
    return
  }
  func.func @transform_0(%arg0: i32) -> (i32, i32, i32, i32) {
    %c0_i32 = arith.constant 0 : i32
    %c0_i32_0 = arith.constant 0 : i32
    %c0_i32_1 = arith.constant 0 : i32
    %c0_i32_2 = arith.constant 0 : i32
    return %arg0, %c0_i32, %c0_i32_0, %c0_i32_1 : i32, i32, i32, i32
  }
  func.func @transform_1(%arg0: i32) -> (i32, i32) {
    %c0_i32 = arith.constant 0 : i32
    %c0_i32_0 = arith.constant 0 : i32
    %c0_i32_1 = arith.constant 0 : i32
    return %c0_i32, %c0_i32_0 : i32, i32
  }
  func.func @transform_2(%arg0: i32) -> (i32, i32) {
    %c0_i32 = arith.constant 0 : i32
    %c0_i32_0 = arith.constant 0 : i32
    %c0_i32_1 = arith.constant 0 : i32
    return %c0_i32, %c0_i32_0 : i32, i32
  }
  func.func @transform_3(%arg0: i32) -> (i32, i32, i32) {
    %c0_i32 = arith.constant 0 : i32
    %c0_i32_0 = arith.constant 0 : i32
    %c0_i32_1 = arith.constant 0 : i32
    return %arg0, %c0_i32, %c0_i32_0 : i32, i32, i32
  }
}

</mosaic_0001>

<llo_original>
// kernel: tpu_custom_call.1
$region0: #{tpu_custom_call.1}
  #allocation0 [shape = 'u32[]', space=smem, size = 0x4, offset = 0x4, fixed_abs, tag = 'smem constant byte address 0x4 - core index']
  #allocation1 [shape = 'u32[144,128]{1,0:T(1,128)}', space=vmem, size = 0x12000, scoped, tag = 'internal scratch']
  #allocation2 [shape = 'f32[8,8,384]{2,1,0:T(8,128)}', space=vmem, size = 0x18000, scoped, tag = 'scratch operand']
  %s0 = inlined_call_operand.vmem [shape: f32[2,8,8,32], index: 0, kind: input, shape index: {}]
  %s1 = inlined_call_operand.vmem [shape: bf16[384,64], index: 1, kind: input, shape index: {}]
  %s2 = inlined_call_operand.vmem [shape: f32[64,64], index: 2, kind: input, shape index: {}]
  %s3 = inlined_call_operand.hbm [shape: f32[2,64,64], index: 3, kind: output, shape index: {}]
  %s4 = sld [smem:[#allocation0]]
  $region45: #{tpu_custom_call.1} parent=0
    _
  %s6 = ssub.s32 1, %s4
  %s7 = scalar_select 0, %s6, %s4
  $region1: #{tpu_custom_call.1} parent=0
    #allocation3 [shape = 'u8[65536]{0}', space=vmem, size = 0x10000, scoped, tag = 'output window, operand 0']
    #allocation4 [shape = 's32[2]{0}', space=sflag, size = 0x8, scoped, tag = 'scoped memory for tpu_custom_call.1']
    %8 = vsyncpa [#allocation4], 0
    %s9 = scalar_lea.sflag [#allocation4], 1
    %10 = vsyncpa %s9, 0
    loop: start=0, step=1, limit=4
    $region2: #{tpu_custom_call.1} parent=1 // loop_pre_header
      _
    $region3: #{tpu_custom_call.1} parent=1 // loop_header
      %s12 = sphi 0, %s16
      %p13 = scmp.ge.s32.totalorder %s12, 4
      %s22 = sphi 0, %s24
      %s25 = sphi 0, %s22
      %s26 = sphi 0, %s25
      %s42 = sphi 0, %s26
      %s46 = sphi 0, %s46
      %s48 = sphi 0, %s46
      %s49 = sphi 0, %s48
      %s63 = sphi 0, %s49
      %s67 = sphi 0, %s67
      %s69 = sphi 0, %s67
      %s70 = sphi 0, %s69
      %s84 = sphi 0, %s70
      %s90 = sphi 0, %s92
      %s93 = sphi 0, %s90
      %s94 = sphi 0, %s93
      %s110 = sphi 0, %s94
    $region4: #{tpu_custom_call.1} parent=1 // loop_header_branch
      %15 = sbr.rel (%p13) target = $region8
    $region5: #{tpu_custom_call.1} parent=1 // loop_body
      %s17 = ssub.s32 %s12, 1
      %s18 = ssub.s32 %s12, 2
      %s19 = sadd.s32 %s12, 1
      %s20 = ssub.s32 %s12, %s19
      %p21 = scmp.eq.s32.totalorder %s20, 0
      %s23 = sadd.s32 %s22, 1
      %s24 = scalar_select %p21, %s22, %s23
      %p27 = pneg %p21
      %p28 = scmp.eq.s32.totalorder %s12, 1
      %p29 = por %p27, %p28
      %p30 = scmp.ne.s32.totalorder %s22, %s25
      %p31 = scmp.eq.s32.totalorder %s12, 0
      %p32 = por %p30, %p31
      %p33 = scmp.ne.s32.totalorder %s22, %s25
      %p34 = scmp.eq.s32.totalorder %s17, 1
      %p35 = por %p33, %p34
      %p36 = scmp.ne.s32.totalorder %s25, %s26
      %p37 = scmp.eq.s32.totalorder %s17, 0
      %p38 = por %p36, %p37
      %p39 = scmp.ne.s32.totalorder %s25, %s26
      %p40 = scmp.eq.s32.totalorder %s18, 1
      %p41 = por %p39, %p40
      %p43 = scmp.ne.s32.totalorder %s26, %s42
      %p44 = scmp.eq.s32.totalorder %s18, 0
      %p45 = por %p43, %p44
      %s47 = sadd.s32 %s46, 1
      %p50 = scmp.eq.s32.totalorder %s12, 1
      %p51 = scmp.ne.s32.totalorder %s46, %s48
      %p52 = scmp.eq.s32.totalorder %s12, 0
      %p53 = por %p51, %p52
      %p54 = scmp.ne.s32.totalorder %s46, %s48
      %p55 = scmp.eq.s32.totalorder %s17, 1
      %p56 = por %p54, %p55
      %p57 = scmp.ne.s32.totalorder %s48, %s49
      %p58 = scmp.eq.s32.totalorder %s17, 0
      %p59 = por %p57, %p58
      %p60 = scmp.ne.s32.totalorder %s48, %s49
      %p61 = scmp.eq.s32.totalorder %s18, 1
      %p62 = por %p60, %p61
      %p64 = scmp.ne.s32.totalorder %s49, %s63
      %p65 = scmp.eq.s32.totalorder %s18, 0
      %p66 = por %p64, %p65
      %s68 = sadd.s32 %s67, 1
      %p71 = scmp.eq.s32.totalorder %s12, 1
      %p72 = scmp.ne.s32.totalorder %s67, %s69
      %p73 = scmp.eq.s32.totalorder %s12, 0
      %p74 = por %p72, %p73
      %p75 = scmp.ne.s32.totalorder %s67, %s69
      %p76 = scmp.eq.s32.totalorder %s17, 1
      %p77 = por %p75, %p76
      %p78 = scmp.ne.s32.totalorder %s69, %s70
      %p79 = scmp.eq.s32.totalorder %s17, 0
      %p80 = por %p78, %p79
      %p81 = scmp.ne.s32.totalorder %s69, %s70
      %p82 = scmp.eq.s32.totalorder %s18, 1
      %p83 = por %p81, %p82
      %p85 = scmp.ne.s32.totalorder %s70, %s84
      %p86 = scmp.eq.s32.totalorder %s18, 0
      %p87 = por %p85, %p86
      %s88 = ssub.s32 %s12, %s19
      %p89 = scmp.eq.s32.totalorder %s88, 0
      %s91 = sadd.s32 %s90, 1
      %s92 = scalar_select %p89, %s90, %s91
      %p95 = pneg %p89
      %p96 = scmp.eq.s32.totalorder %s12, 1
      %p97 = por %p95, %p96
      %p98 = scmp.ne.s32.totalorder %s90, %s93
      %p99 = scmp.eq.s32.totalorder %s12, 0
      %p100 = por %p98, %p99
      %p101 = scmp.ne.s32.totalorder %s90, %s93
      %p102 = scmp.eq.s32.totalorder %s17, 1
      %p103 = por %p101, %p102
      %p104 = scmp.ne.s32.totalorder %s93, %s94
      %p105 = scmp.eq.s32.totalorder %s17, 0
      %p106 = por %p104, %p105
      %p107 = scmp.ne.s32.totalorder %s93, %s94
      %p108 = scmp.eq.s32.totalorder %s18, 1
      %p109 = por %p107, %p108
      %p111 = scmp.ne.s32.totalorder %s94, %s110
      %p112 = scmp.eq.s32.totalorder %s18, 0
      %p113 = por %p111, %p112
      %p114 = scmp.le.s32.totalorder 1, %s12
      %p115 = scmp.lt.s32.totalorder %s12, 3
      %p116 = pnand %p114, %p115
      %p117 = pneg %p116
      // Predicated region
      $region9: #{tpu_custom_call.1} parent=5 // pred_check
        _
      $region10: #{tpu_custom_call.1} parent=5 // pred_check_branch
        %119 = sbr.rel (%p116) target = $region12
      $region11: #{tpu_custom_call.1} parent=5 // pred_region
        %s120 = ssub.s32 %s12, 1
        // Predicated region
        $region13: #{tpu_custom_call.1} parent=11 // pred_check
          %p121 = pneg %p59
        $region14: #{tpu_custom_call.1} parent=11 // pred_check_branch
          %123 = sbr.rel (%p121) target = $region16
        $region15: #{tpu_custom_call.1} parent=11 // pred_region
          _
        $region16: #{tpu_custom_call.1} parent=11 // pred_fallthru
          _
        // Predicated region
        $region17: #{tpu_custom_call.1} parent=11 // pred_check
          %p124 = pneg %p80
        $region18: #{tpu_custom_call.1} parent=11 // pred_check_branch
          %126 = sbr.rel (%p124) target = $region20
        $region19: #{tpu_custom_call.1} parent=11 // pred_region
          _
        $region20: #{tpu_custom_call.1} parent=11 // pred_fallthru
          _
      $region12: #{tpu_custom_call.1} parent=5 // pred_fallthru
        _
      %p127 = scmp.lt.s32.totalorder %s12, 2
      // Predicated region
      $region21: #{tpu_custom_call.1} parent=5 // pred_check
        %p128 = pneg %p127
      $region22: #{tpu_custom_call.1} parent=5 // pred_check_branch
        %130 = sbr.rel (%p128) target = $region24
      $region23: #{tpu_custom_call.1} parent=5 // pred_region
        // Predicated region
        $region25: #{tpu_custom_call.1} parent=23 // pred_check
          %p131 = pneg %p32
        $region26: #{tpu_custom_call.1} parent=23 // pred_check_branch
          %133 = sbr.rel (%p131) target = $region28
        $region27: #{tpu_custom_call.1} parent=23 // pred_region
          %p134 = scmp.lt.s32.totalorder %s12, 1
          %s135 = scalar_select %p134, %s12, 1
          %s136 = smul.addr %s135, 8
          %s137 = smul.addr %s136, 8
          %s138 = scalar_lea.vmem %s0, %s137
        $region28: #{tpu_custom_call.1} parent=23 // pred_fallthru
          _
      $region24: #{tpu_custom_call.1} parent=5 // pred_fallthru
        _
      %p139 = scmp.le.s32.totalorder 1, %s12
      %p140 = scmp.lt.s32.totalorder %s12, 3
      %p141 = pnand %p139, %p140
      %p142 = pneg %p141
      // Predicated region
      $region29: #{tpu_custom_call.1} parent=5 // pred_check
        _
      $region30: #{tpu_custom_call.1} parent=5 // pred_check_branch
        %144 = sbr.rel (%p141) target = $region32
      $region31: #{tpu_custom_call.1} parent=5 // pred_region
        %s145 = ssub.s32 %s12, 1
        %p146 = scmp.lt.s32.totalorder %s17, 1
        %s147 = scalar_select %p146, %s17, 1
        %s148 = smul.addr %s147, 8
        %s149 = smul.addr %s148, 8
        %s150 = scalar_lea.vmem %s0, %s149
        %p151 = pneg %p38
        %p152 = pneg %p35
        %p153 = pneg %p59
        %p154 = pneg %p56
        %p155 = pneg %p80
        %p156 = pneg %p77
        %p157 = pneg %p106
        %p158 = pneg %p103
        %s159 = sand.u32 %s93, 1
        %s160 = scalar_lea.sflag [#allocation4], %s159
        %s161 = sand.u32 %s93, 1
        %s162 = smul.addr %s161, 64
        %s163 = scalar_lea.vmem [#allocation3], %s162
        %p164 = scmp.lt.s32.totalorder %s17, 1
        %s165 = scalar_select %p164, %s17, 1
        %s166 = smul.addr %s165, 8
        %s167 = smul.addr %s166, 8
        %s168 = scalar_lea.vmem %s0, %s167
        %170 = vst [vmem:[#allocation2] sm:$0xff] 0.0
        %171 = vst [vmem:[#allocation2 + $0x8] sm:$0xff] 0.0
        %172 = vst [vmem:[#allocation2 + $0x10] sm:$0xff] 0.0
        %173 = vst [vmem:[#allocation2 + $0x18] sm:$0xff] 0.0
        %174 = vst [vmem:[#allocation2 + $0x20] sm:$0xff] 0.0
        %175 = vst [vmem:[#allocation2 + $0x28] sm:$0xff] 0.0
        %176 = vst [vmem:[#allocation2 + $0x30] sm:$0xff] 0.0
        %177 = vst [vmem:[#allocation2 + $0x38] sm:$0xff] 0.0
        %178 = vst [vmem:[#allocation2 + $0x40] sm:$0xff] 0.0
        %179 = vst [vmem:[#allocation2 + $0x48] sm:$0xff] 0.0
        %180 = vst [vmem:[#allocation2 + $0x50] sm:$0xff] 0.0
        %181 = vst [vmem:[#allocation2 + $0x58] sm:$0xff] 0.0
        %182 = vst [vmem:[#allocation2 + $0x60] sm:$0xff] 0.0
        %183 = vst [vmem:[#allocation2 + $0x68] sm:$0xff] 0.0
        %184 = vst [vmem:[#allocation2 + $0x70] sm:$0xff] 0.0
        %185 = vst [vmem:[#allocation2 + $0x78] sm:$0xff] 0.0
        %186 = vst [vmem:[#allocation2 + $0x80] sm:$0xff] 0.0
        %187 = vst [vmem:[#allocation2 + $0x88] sm:$0xff] 0.0
        %188 = vst [vmem:[#allocation2 + $0x90] sm:$0xff] 0.0
        %189 = vst [vmem:[#allocation2 + $0x98] sm:$0xff] 0.0
        %190 = vst [vmem:[#allocation2 + $0xa0] sm:$0xff] 0.0
        %191 = vst [vmem:[#allocation2 + $0xa8] sm:$0xff] 0.0
        %192 = vst [vmem:[#allocation2 + $0xb0] sm:$0xff] 0.0
        %193 = vst [vmem:[#allocation2 + $0xb8] sm:$0xff] 0.0
        %v194 = vld [vmem:[%s168] sm:$0x7f]
        %v195 = vld [vmem:[%s168 + $0x8] sm:$0x7f]
        %v196 = vld [vmem:[%s168 + $0x10] sm:$0x7f]
        %v197 = vld [vmem:[%s168 + $0x18] sm:$0x7f]
        %v198 = vld [vmem:[%s168 + $0x20] sm:$0x7f]
        %v199 = vld [vmem:[%s168 + $0x28] sm:$0x7f]
        %v200 = vld [vmem:[%s168 + $0x30] sm:$0x7f]
        %v208 = vrot.slane %v194, 7
        %v209 = vrot.slane %v195, 7
        %v210 = vrot.slane %v196, 7
        %v211 = vrot.slane %v197, 7
        %v212 = vrot.slane %v198, 7
        %v213 = vrot.slane %v199, 7
        %v214 = vrot.slane %v200, 7
        %215 = vrot.lane.b32.xlu0 %v208, 4
        %v216 = vpop.permute.xlu0 %215
        %217 = vrot.lane.b32.xlu0 %v209, 4
        %v218 = vpop.permute.xlu0 %217
        %219 = vrot.lane.b32.xlu0 %v210, 4
        %v220 = vpop.permute.xlu0 %219
        %221 = vrot.lane.b32.xlu0 %v211, 4
        %v222 = vpop.permute.xlu0 %221
        %223 = vrot.lane.b32.xlu0 %v212, 4
        %v224 = vpop.permute.xlu0 %223
        %225 = vrot.lane.b32.xlu0 %v213, 4
        %v226 = vpop.permute.xlu0 %225
        %227 = vrot.lane.b32.xlu0 %v214, 4
        %v228 = vpop.permute.xlu0 %227
        %s236 = scalar_lea.vmem [#allocation2], 24
        %vm237 = vcmask 293921
        %238 = vst.msk [vmem:[%s236] sm:$0xfe] %vm237, %v216
        %239 = vst.msk [vmem:[%s236 + $0x18] sm:$0xfe] %vm237, %v218
        %240 = vst.msk [vmem:[%s236 + $0x30] sm:$0xfe] %vm237, %v220
        %241 = vst.msk [vmem:[%s236 + $0x48] sm:$0xfe] %vm237, %v222
        %242 = vst.msk [vmem:[%s236 + $0x60] sm:$0xfe] %vm237, %v224
        %243 = vst.msk [vmem:[%s236 + $0x78] sm:$0xfe] %vm237, %v226
        %244 = vst.msk [vmem:[%s236 + $0x90] sm:$0xfe] %vm237, %v228
        %v245 = vld [vmem:[%s168] sm:$0xff]
        %v246 = vld [vmem:[%s168 + $0x8] sm:$0xff]
        %v247 = vld [vmem:[%s168 + $0x10] sm:$0xff]
        %v248 = vld [vmem:[%s168 + $0x18] sm:$0xff]
        %v249 = vld [vmem:[%s168 + $0x20] sm:$0xff]
        %v250 = vld [vmem:[%s168 + $0x28] sm:$0xff]
        %v251 = vld [vmem:[%s168 + $0x30] sm:$0xff]
        %259 = vrot.lane.b32.xlu0 %v245, 44
        %v260 = vpop.permute.xlu0 %259
        %261 = vrot.lane.b32.xlu0 %v246, 44
        %v262 = vpop.permute.xlu0 %261
        %263 = vrot.lane.b32.xlu0 %v247, 44
        %v264 = vpop.permute.xlu0 %263
        %265 = vrot.lane.b32.xlu0 %v248, 44
        %v266 = vpop.permute.xlu0 %265
        %267 = vrot.lane.b32.xlu0 %v249, 44
        %v268 = vpop.permute.xlu0 %267
        %269 = vrot.lane.b32.xlu0 %v250, 44
        %v270 = vpop.permute.xlu0 %269
        %271 = vrot.lane.b32.xlu0 %v251, 44
        %v272 = vpop.permute.xlu0 %271
        %vm280 = vcmask 621920
        %281 = vst.msk [vmem:[%s236] sm:$0xff] %vm280, %v260
        %282 = vst.msk [vmem:[%s236 + $0x18] sm:$0xff] %vm280, %v262
        %283 = vst.msk [vmem:[%s236 + $0x30] sm:$0xff] %vm280, %v264
        %284 = vst.msk [vmem:[%s236 + $0x48] sm:$0xff] %vm280, %v266
        %285 = vst.msk [vmem:[%s236 + $0x60] sm:$0xff] %vm280, %v268
        %286 = vst.msk [vmem:[%s236 + $0x78] sm:$0xff] %vm280, %v270
        %287 = vst.msk [vmem:[%s236 + $0x90] sm:$0xff] %vm280, %v272
        %v288 = vld [vmem:[%s168 + $0x1] sm:$0x7f]
        %v289 = vld [vmem:[%s168 + $0x9] sm:$0x7f]
        %v290 = vld [vmem:[%s168 + $0x11] sm:$0x7f]
        %v291 = vld [vmem:[%s168 + $0x19] sm:$0x7f]
        %v292 = vld [vmem:[%s168 + $0x21] sm:$0x7f]
        %v293 = vld [vmem:[%s168 + $0x29] sm:$0x7f]
        %v294 = vld [vmem:[%s168 + $0x31] sm:$0x7f]
        %302 = vrot.lane.b32.xlu0 %v288, 84
        %v303 = vpop.permute.xlu0 %302
        %304 = vrot.lane.b32.xlu0 %v289, 84
        %v305 = vpop.permute.xlu0 %304
        %306 = vrot.lane.b32.xlu0 %v290, 84
        %v307 = vpop.permute.xlu0 %306
        %308 = vrot.lane.b32.xlu0 %v291, 84
        %v309 = vpop.permute.xlu0 %308
        %310 = vrot.lane.b32.xlu0 %v292, 84
        %v311 = vpop.permute.xlu0 %310
        %312 = vrot.lane.b32.xlu0 %v293, 84
        %v313 = vpop.permute.xlu0 %312
        %314 = vrot.lane.b32.xlu0 %v294, 84
        %v315 = vpop.permute.xlu0 %314
        %vm323 = vcmask 948896
        %324 = vst.msk [vmem:[%s236] sm:$0x7f] %vm323, %v303
        %325 = vst.msk [vmem:[%s236 + $0x18] sm:$0x7f] %vm323, %v305
        %326 = vst.msk [vmem:[%s236 + $0x30] sm:$0x7f] %vm323, %v307
        %327 = vst.msk [vmem:[%s236 + $0x48] sm:$0x7f] %vm323, %v309
        %328 = vst.msk [vmem:[%s236 + $0x60] sm:$0x7f] %vm323, %v311
        %329 = vst.msk [vmem:[%s236 + $0x78] sm:$0x7f] %vm323, %v313
        %330 = vst.msk [vmem:[%s236 + $0x90] sm:$0x7f] %vm323, %v315
        %v331 = vld [vmem:[%s168] sm:$0x7f]
        %v332 = vld [vmem:[%s168 + $0x8] sm:$0x7f]
        %v333 = vld [vmem:[%s168 + $0x10] sm:$0x7f]
        %v334 = vld [vmem:[%s168 + $0x18] sm:$0x7f]
        %v335 = vld [vmem:[%s168 + $0x20] sm:$0x7f]
        %v336 = vld [vmem:[%s168 + $0x28] sm:$0x7f]
        %v337 = vld [vmem:[%s168 + $0x30] sm:$0x7f]
        %v338 = vld [vmem:[%s168 + $0x38] sm:$0x7f]
        %v347 = vrot.slane %v331, 7
        %v348 = vrot.slane %v332, 7
        %v349 = vrot.slane %v333, 7
        %v350 = vrot.slane %v334, 7
        %v351 = vrot.slane %v335, 7
        %v352 = vrot.slane %v336, 7
        %v353 = vrot.slane %v337, 7
        %v354 = vrot.slane %v338, 7
        %355 = vrot.lane.b32.xlu0 %v347, 124
        %v356 = vpop.permute.xlu0 %355
        %357 = vrot.lane.b32.xlu0 %v348, 124
        %v358 = vpop.permute.xlu0 %357
        %359 = vrot.lane.b32.xlu0 %v349, 124
        %v360 = vpop.permute.xlu0 %359
        %361 = vrot.lane.b32.xlu0 %v350, 124
        %v362 = vpop.permute.xlu0 %361
        %363 = vrot.lane.b32.xlu0 %v351, 124
        %v364 = vpop.permute.xlu0 %363
        %365 = vrot.lane.b32.xlu0 %v352, 124
        %v366 = vpop.permute.xlu0 %365
        %367 = vrot.lane.b32.xlu0 %v353, 124
        %v368 = vpop.permute.xlu0 %367
        %369 = vrot.lane.b32.xlu0 %v354, 124
        %v370 = vpop.permute.xlu0 %369
        %vm379 = vcmask 1048545
        %380 = vst.msk [vmem:[#allocation2] sm:$0xfe] %vm379, %v356
        %vm381 = vcmask 228353
        %382 = vst.msk [vmem:[#allocation2 + $0x8] sm:$0xfe] %vm381, %v356
        %383 = vst.msk [vmem:[#allocation2 + $0x18] sm:$0xfe] %vm379, %v358
        %384 = vst.msk [vmem:[#allocation2 + $0x20] sm:$0xfe] %vm381, %v358
        %385 = vst.msk [vmem:[#allocation2 + $0x30] sm:$0xfe] %vm379, %v360
        %386 = vst.msk [vmem:[#allocation2 + $0x38] sm:$0xfe] %vm381, %v360
        %387 = vst.msk [vmem:[#allocation2 + $0x48] sm:$0xfe] %vm379, %v362
        %388 = vst.msk [vmem:[#allocation2 + $0x50] sm:$0xfe] %vm381, %v362
        %389 = vst.msk [vmem:[#allocation2 + $0x60] sm:$0xfe] %vm379, %v364
        %390 = vst.msk [vmem:[#allocation2 + $0x68] sm:$0xfe] %vm381, %v364
        %391 = vst.msk [vmem:[#allocation2 + $0x78] sm:$0xfe] %vm379, %v366
        %392 = vst.msk [vmem:[#allocation2 + $0x80] sm:$0xfe] %vm381, %v366
        %393 = vst.msk [vmem:[#allocation2 + $0x90] sm:$0xfe] %vm379, %v368
        %394 = vst.msk [vmem:[#allocation2 + $0x98] sm:$0xfe] %vm381, %v368
        %395 = vst.msk [vmem:[#allocation2 + $0xa8] sm:$0xfe] %vm379, %v370
        %396 = vst.msk [vmem:[#allocation2 + $0xb0] sm:$0xfe] %vm381, %v370
        %v397 = vld [vmem:[%s168] sm:$0xff]
        %v398 = vld [vmem:[%s168 + $0x8] sm:$0xff]
        %v399 = vld [vmem:[%s168 + $0x10] sm:$0xff]
        %v400 = vld [vmem:[%s168 + $0x18] sm:$0xff]
        %v401 = vld [vmem:[%s168 + $0x20] sm:$0xff]
        %v402 = vld [vmem:[%s168 + $0x28] sm:$0xff]
        %v403 = vld [vmem:[%s168 + $0x30] sm:$0xff]
        %v404 = vld [vmem:[%s168 + $0x38] sm:$0xff]
        %413 = vrot.lane.b32.xlu0 %v397, 36
        %v414 = vpop.permute.xlu0 %413
        %415 = vrot.lane.b32.xlu0 %v398, 36
        %v416 = vpop.permute.xlu0 %415
        %417 = vrot.lane.b32.xlu0 %v399, 36
        %v418 = vpop.permute.xlu0 %417
        %419 = vrot.lane.b32.xlu0 %v400, 36
        %v420 = vpop.permute.xlu0 %419
        %421 = vrot.lane.b32.xlu0 %v401, 36
        %v422 = vpop.permute.xlu0 %421
        %423 = vrot.lane.b32.xlu0 %v402, 36
        %v424 = vpop.permute.xlu0 %423
        %425 = vrot.lane.b32.xlu0 %v403, 36
        %v426 = vpop.permute.xlu0 %425
        %427 = vrot.lane.b32.xlu0 %v404, 36
        %v428 = vpop.permute.xlu0 %427
        %vm437 = vcmask 556320
        %438 = vst.msk [vmem:[#allocation2 + $0x8] sm:$0xff] %vm437, %v414
        %439 = vst.msk [vmem:[#allocation2 + $0x20] sm:$0xff] %vm437, %v416
        %440 = vst.msk [vmem:[#allocation2 + $0x38] sm:$0xff] %vm437, %v418
        %441 = vst.msk [vmem:[#allocation2 + $0x50] sm:$0xff] %vm437, %v420
        %442 = vst.msk [vmem:[#allocation2 + $0x68] sm:$0xff] %vm437, %v422
        %443 = vst.msk [vmem:[#allocation2 + $0x80] sm:$0xff] %vm437, %v424
        %444 = vst.msk [vmem:[#allocation2 + $0x98] sm:$0xff] %vm437, %v426
        %445 = vst.msk [vmem:[#allocation2 + $0xb0] sm:$0xff] %vm437, %v428
        %v446 = vld [vmem:[%s168 + $0x1] sm:$0x7f]
        %v447 = vld [vmem:[%s168 + $0x9] sm:$0x7f]
        %v448 = vld [vmem:[%s168 + $0x11] sm:$0x7f]
        %v449 = vld [vmem:[%s168 + $0x19] sm:$0x7f]
        %v450 = vld [vmem:[%s168 + $0x21] sm:$0x7f]
        %v451 = vld [vmem:[%s168 + $0x29] sm:$0x7f]
        %v452 = vld [vmem:[%s168 + $0x31] sm:$0x7f]
        %v453 = vld [vmem:[%s168 + $0x39] sm:$0x7f]
        %462 = vrot.lane.b32.xlu0 %v446, 76
        %v463 = vpop.permute.xlu0 %462
        %464 = vrot.lane.b32.xlu0 %v447, 76
        %v465 = vpop.permute.xlu0 %464
        %466 = vrot.lane.b32.xlu0 %v448, 76
        %v467 = vpop.permute.xlu0 %466
        %468 = vrot.lane.b32.xlu0 %v449, 76
        %v469 = vpop.permute.xlu0 %468
        %470 = vrot.lane.b32.xlu0 %v450, 76
        %v471 = vpop.permute.xlu0 %470
        %472 = vrot.lane.b32.xlu0 %v451, 76
        %v473 = vpop.permute.xlu0 %472
        %474 = vrot.lane.b32.xlu0 %v452, 76
        %v475 = vpop.permute.xlu0 %474
        %476 = vrot.lane.b32.xlu0 %v453, 76
        %v477 = vpop.permute.xlu0 %476
        %vm486 = vcmask 883296
        %487 = vst.msk [vmem:[#allocation2 + $0x8] sm:$0x7f] %vm486, %v463
        %488 = vst.msk [vmem:[#allocation2 + $0x20] sm:$0x7f] %vm486, %v465
        %489 = vst.msk [vmem:[#allocation2 + $0x38] sm:$0x7f] %vm486, %v467
        %490 = vst.msk [vmem:[#allocation2 + $0x50] sm:$0x7f] %vm486, %v469
        %491 = vst.msk [vmem:[#allocation2 + $0x68] sm:$0x7f] %vm486, %v471
        %492 = vst.msk [vmem:[#allocation2 + $0x80] sm:$0x7f] %vm486, %v473
        %493 = vst.msk [vmem:[#allocation2 + $0x98] sm:$0x7f] %vm486, %v475
        %494 = vst.msk [vmem:[#allocation2 + $0xb0] sm:$0x7f] %vm486, %v477
        %s495 = scalar_lea.vmem %s168, 8
        %v496 = vld [vmem:[%s495] sm:$0x7f]
        %v497 = vld [vmem:[%s495 + $0x8] sm:$0x7f]
        %v498 = vld [vmem:[%s495 + $0x10] sm:$0x7f]
        %v499 = vld [vmem:[%s495 + $0x18] sm:$0x7f]
        %v500 = vld [vmem:[%s495 + $0x20] sm:$0x7f]
        %v501 = vld [vmem:[%s495 + $0x28] sm:$0x7f]
        %v502 = vld [vmem:[%s495 + $0x30] sm:$0x7f]
        %v510 = vrot.slane %v496, 7
        %v511 = vrot.slane %v497, 7
        %v512 = vrot.slane %v498, 7
        %v513 = vrot.slane %v499, 7
        %v514 = vrot.slane %v500, 7
        %v515 = vrot.slane %v501, 7
        %v516 = vrot.slane %v502, 7
        %517 = vrot.lane.b32.xlu0 %v510, 116
        %v518 = vpop.permute.xlu0 %517
        %519 = vrot.lane.b32.xlu0 %v511, 116
        %v520 = vpop.permute.xlu0 %519
        %521 = vrot.lane.b32.xlu0 %v512, 116
        %v522 = vpop.permute.xlu0 %521
        %523 = vrot.lane.b32.xlu0 %v513, 116
        %v524 = vpop.permute.xlu0 %523
        %525 = vrot.lane.b32.xlu0 %v514, 116
        %v526 = vpop.permute.xlu0 %525
        %527 = vrot.lane.b32.xlu0 %v515, 116
        %v528 = vpop.permute.xlu0 %527
        %529 = vrot.lane.b32.xlu0 %v516, 116
        %v530 = vpop.permute.xlu0 %529
        %vm538 = vcmask 1048481
        %539 = vst.msk [vmem:[#allocation2 + $0x8] sm:$0xfe] %vm538, %v518
        %vm540 = vcmask 162817
        %541 = vst.msk [vmem:[#allocation2 + $0x10] sm:$0xfe] %vm540, %v518
        %542 = vst.msk [vmem:[#allocation2 + $0x20] sm:$0xfe] %vm538, %v520
        %543 = vst.msk [vmem:[#allocation2 + $0x28] sm:$0xfe] %vm540, %v520
        %544 = vst.msk [vmem:[#allocation2 + $0x38] sm:$0xfe] %vm538, %v522
        %545 = vst.msk [vmem:[#allocation2 + $0x40] sm:$0xfe] %vm540, %v522
        %546 = vst.msk [vmem:[#allocation2 + $0x50] sm:$0xfe] %vm538, %v524
        %547 = vst.msk [vmem:[#allocation2 + $0x58] sm:$0xfe] %vm540, %v524
        %548 = vst.msk [vmem:[#allocation2 + $0x68] sm:$0xfe] %vm538, %v526
        %549 = vst.msk [vmem:[#allocation2 + $0x70] sm:$0xfe] %vm540, %v526
        %550 = vst.msk [vmem:[#allocation2 + $0x80] sm:$0xfe] %vm538, %v528
        %551 = vst.msk [vmem:[#allocation2 + $0x88] sm:$0xfe] %vm540, %v528
        %552 = vst.msk [vmem:[#allocation2 + $0x98] sm:$0xfe] %vm538, %v530
        %553 = vst.msk [vmem:[#allocation2 + $0xa0] sm:$0xfe] %vm540, %v530
        %v554 = vld [vmem:[%s495] sm:$0xff]
        %v555 = vld [vmem:[%s495 + $0x8] sm:$0xff]
        %v556 = vld [vmem:[%s495 + $0x10] sm:$0xff]
        %v557 = vld [vmem:[%s495 + $0x18] sm:$0xff]
        %v558 = vld [vmem:[%s495 + $0x20] sm:$0xff]
        %v559 = vld [vmem:[%s495 + $0x28] sm:$0xff]
        %v560 = vld [vmem:[%s495 + $0x30] sm:$0xff]
        %568 = vrot.lane.b32.xlu0 %v554, 28
        %v569 = vpop.permute.xlu0 %568
        %570 = vrot.lane.b32.xlu0 %v555, 28
        %v571 = vpop.permute.xlu0 %570
        %572 = vrot.lane.b32.xlu0 %v556, 28
        %v573 = vpop.permute.xlu0 %572
        %574 = vrot.lane.b32.xlu0 %v557, 28
        %v575 = vpop.permute.xlu0 %574
        %576 = vrot.lane.b32.xlu0 %v558, 28
        %v577 = vpop.permute.xlu0 %576
        %578 = vrot.lane.b32.xlu0 %v559, 28
        %v579 = vpop.permute.xlu0 %578
        %580 = vrot.lane.b32.xlu0 %v560, 28
        %v581 = vpop.permute.xlu0 %580
        %vm589 = vcmask 490720
        %590 = vst.msk [vmem:[#allocation2 + $0x10] sm:$0xff] %vm589, %v569
        %591 = vst.msk [vmem:[#allocation2 + $0x28] sm:$0xff] %vm589, %v571
        %592 = vst.msk [vmem:[#allocation2 + $0x40] sm:$0xff] %vm589, %v573
        %593 = vst.msk [vmem:[#allocation2 + $0x58] sm:$0xff] %vm589, %v575
        %594 = vst.msk [vmem:[#allocation2 + $0x70] sm:$0xff] %vm589, %v577
        %595 = vst.msk [vmem:[#allocation2 + $0x88] sm:$0xff] %vm589, %v579
        %596 = vst.msk [vmem:[#allocation2 + $0xa0] sm:$0xff] %vm589, %v581
        %v597 = vld [vmem:[%s495 + $0x1] sm:$0x7f]
        %v598 = vld [vmem:[%s495 + $0x9] sm:$0x7f]
        %v599 = vld [vmem:[%s495 + $0x11] sm:$0x7f]
        %v600 = vld [vmem:[%s495 + $0x19] sm:$0x7f]
        %v601 = vld [vmem:[%s495 + $0x21] sm:$0x7f]
        %v602 = vld [vmem:[%s495 + $0x29] sm:$0x7f]
        %v603 = vld [vmem:[%s495 + $0x31] sm:$0x7f]
        %611 = vrot.lane.b32.xlu0 %v597, 68
        %v612 = vpop.permute.xlu0 %611
        %613 = vrot.lane.b32.xlu0 %v598, 68
        %v614 = vpop.permute.xlu0 %613
        %615 = vrot.lane.b32.xlu0 %v599, 68
        %v616 = vpop.permute.xlu0 %615
        %617 = vrot.lane.b32.xlu0 %v600, 68
        %v618 = vpop.permute.xlu0 %617
        %619 = vrot.lane.b32.xlu0 %v601, 68
        %v620 = vpop.permute.xlu0 %619
        %621 = vrot.lane.b32.xlu0 %v602, 68
        %v622 = vpop.permute.xlu0 %621
        %623 = vrot.lane.b32.xlu0 %v603, 68
        %v624 = vpop.permute.xlu0 %623
        %vm632 = vcmask 817696
        %633 = vst.msk [vmem:[#allocation2 + $0x10] sm:$0x7f] %vm632, %v612
        %634 = vst.msk [vmem:[#allocation2 + $0x28] sm:$0x7f] %vm632, %v614
        %635 = vst.msk [vmem:[#allocation2 + $0x40] sm:$0x7f] %vm632, %v616
        %636 = vst.msk [vmem:[#allocation2 + $0x58] sm:$0x7f] %vm632, %v618
        %637 = vst.msk [vmem:[#allocation2 + $0x70] sm:$0x7f] %vm632, %v620
        %638 = vst.msk [vmem:[#allocation2 + $0x88] sm:$0x7f] %vm632, %v622
        %639 = vst.msk [vmem:[#allocation2 + $0xa0] sm:$0x7f] %vm632, %v624
        %v640 = vld [vmem:[#allocation2] sm:$0xff]
        %v641 = vld [vmem:[#allocation2 + $0x8] sm:$0xff]
        %v642 = vld [vmem:[#allocation2 + $0x10] sm:$0xff]
        %v643 = vld [vmem:[#allocation2 + $0x18] sm:$0xff]
        %v644 = vld [vmem:[#allocation2 + $0x20] sm:$0xff]
        %v645 = vld [vmem:[#allocation2 + $0x28] sm:$0xff]
        %v646 = vld [vmem:[#allocation2 + $0x30] sm:$0xff]
        %v647 = vld [vmem:[#allocation2 + $0x38] sm:$0xff]
        %v648 = vld [vmem:[#allocation2 + $0x40] sm:$0xff]
        %v649 = vld [vmem:[#allocation2 + $0x48] sm:$0xff]
        %v650 = vld [vmem:[#allocation2 + $0x50] sm:$0xff]
        %v651 = vld [vmem:[#allocation2 + $0x58] sm:$0xff]
        %v652 = vld [vmem:[#allocation2 + $0x60] sm:$0xff]
        %v653 = vld [vmem:[#allocation2 + $0x68] sm:$0xff]
        %v654 = vld [vmem:[#allocation2 + $0x70] sm:$0xff]
        %v655 = vld [vmem:[#allocation2 + $0x78] sm:$0xff]
        %v656 = vld [vmem:[#allocation2 + $0x80] sm:$0xff]
        %v657 = vld [vmem:[#allocation2 + $0x88] sm:$0xff]
        %v658 = vld [vmem:[#allocation2 + $0x90] sm:$0xff]
        %v659 = vld [vmem:[#allocation2 + $0x98] sm:$0xff]
        %v660 = vld [vmem:[#allocation2 + $0xa0] sm:$0xff]
        %v661 = vld [vmem:[#allocation2 + $0xa8] sm:$0xff]
        %v662 = vld [vmem:[#allocation2 + $0xb0] sm:$0xff]
        %v663 = vld [vmem:[#allocation2 + $0xb8] sm:$0xff]
        %v664 = vpack.c.bf16 %v643, %v640
        %v665 = vpack.c.bf16 %v644, %v641
        %v666 = vpack.c.bf16 %v645, %v642
        %v667 = vpack.c.bf16 %v649, %v646
        %v668 = vpack.c.bf16 %v650, %v647
        %v669 = vpack.c.bf16 %v651, %v648
        %v670 = vpack.c.bf16 %v655, %v652
        %v671 = vpack.c.bf16 %v656, %v653
        %v672 = vpack.c.bf16 %v657, %v654
        %v673 = vpack.c.bf16 %v661, %v658
        %v674 = vpack.c.bf16 %v662, %v659
        %v675 = vpack.c.bf16 %v663, %v660
        %v676 = vld [vmem:[%s1] sm:$0xf]
        %v677 = vld [vmem:[%s1 + $0x4] sm:$0xf]
        %v678 = vld [vmem:[%s1 + $0x8] sm:$0xf]
        %v679 = vld [vmem:[%s1 + $0xc] sm:$0xf]
        %v680 = vld [vmem:[%s1 + $0x10] sm:$0xf]
        %v681 = vld [vmem:[%s1 + $0x14] sm:$0xf]
        %v682 = vld [vmem:[%s1 + $0x18] sm:$0xf]
        %v683 = vld [vmem:[%s1 + $0x1c] sm:$0xf]
        %v684 = vld [vmem:[%s1 + $0x20] sm:$0xf]
        %v685 = vld [vmem:[%s1 + $0x24] sm:$0xf]
        %v686 = vld [vmem:[%s1 + $0x28] sm:$0xf]
        %v687 = vld [vmem:[%s1 + $0x2c] sm:$0xf]
        %v688 = vld [vmem:[%s1 + $0x30] sm:$0xf]
        %v689 = vld [vmem:[%s1 + $0x34] sm:$0xf]
        %v690 = vld [vmem:[%s1 + $0x38] sm:$0xf]
        %v691 = vld [vmem:[%s1 + $0x3c] sm:$0xf]
        %v692 = vld [vmem:[%s1 + $0x40] sm:$0xf]
        %v693 = vld [vmem:[%s1 + $0x44] sm:$0xf]
        %v694 = vld [vmem:[%s1 + $0x48] sm:$0xf]
        %v695 = vld [vmem:[%s1 + $0x4c] sm:$0xf]
        %v696 = vld [vmem:[%s1 + $0x50] sm:$0xf]
        %v697 = vld [vmem:[%s1 + $0x54] sm:$0xf]
        %v698 = vld [vmem:[%s1 + $0x58] sm:$0xf]
        %v699 = vld [vmem:[%s1 + $0x5c] sm:$0xf]
        %v700 = vld [vmem:[%s1 + $0x60] sm:$0xf]
        %v701 = vld [vmem:[%s1 + $0x64] sm:$0xf]
        %v702 = vld [vmem:[%s1 + $0x68] sm:$0xf]
        %v703 = vld [vmem:[%s1 + $0x6c] sm:$0xf]
        %v704 = vld [vmem:[%s1 + $0x70] sm:$0xf]
        %v705 = vld [vmem:[%s1 + $0x74] sm:$0xf]
        %v706 = vld [vmem:[%s1 + $0x78] sm:$0xf]
        %v707 = vld [vmem:[%s1 + $0x7c] sm:$0xf]
        %v708 = vld [vmem:[%s1 + $0x80] sm:$0xf]
        %v709 = vld [vmem:[%s1 + $0x84] sm:$0xf]
        %v710 = vld [vmem:[%s1 + $0x88] sm:$0xf]
        %v711 = vld [vmem:[%s1 + $0x8c] sm:$0xf]
        %v712 = vld [vmem:[%s1 + $0x90] sm:$0xf]
        %v713 = vld [vmem:[%s1 + $0x94] sm:$0xf]
        %v714 = vld [vmem:[%s1 + $0x98] sm:$0xf]
        %v715 = vld [vmem:[%s1 + $0x9c] sm:$0xf]
        %v716 = vld [vmem:[%s1 + $0xa0] sm:$0xf]
        %v717 = vld [vmem:[%s1 + $0xa4] sm:$0xf]
        %v718 = vld [vmem:[%s1 + $0xa8] sm:$0xf]
        %v719 = vld [vmem:[%s1 + $0xac] sm:$0xf]
        %v720 = vld [vmem:[%s1 + $0xb0] sm:$0xf]
        %v721 = vld [vmem:[%s1 + $0xb4] sm:$0xf]
        %v722 = vld [vmem:[%s1 + $0xb8] sm:$0xf]
        %v723 = vld [vmem:[%s1 + $0xbc] sm:$0xf]
        %v772 = vunpack.c.l.b16 %v676
        %v773 = vunpack.c.l.b16 %v677
        %v774 = vunpack.c.l.b16 %v678
        %v775 = vunpack.c.l.b16 %v679
        %v776 = vunpack.c.l.b16 %v680
        %v777 = vunpack.c.l.b16 %v681
        %v778 = vunpack.c.l.b16 %v682
        %v779 = vunpack.c.l.b16 %v683
        %v780 = vunpack.c.l.b16 %v684
        %v781 = vunpack.c.l.b16 %v685
        %v782 = vunpack.c.l.b16 %v686
        %v783 = vunpack.c.l.b16 %v687
        %v784 = vunpack.c.l.b16 %v688
        %v785 = vunpack.c.l.b16 %v689
        %v786 = vunpack.c.l.b16 %v690
        %v787 = vunpack.c.l.b16 %v691
        %v788 = vunpack.c.l.b16 %v692
        %v789 = vunpack.c.l.b16 %v693
        %v790 = vunpack.c.l.b16 %v694
        %v791 = vunpack.c.l.b16 %v695
        %v792 = vunpack.c.l.b16 %v696
        %v793 = vunpack.c.l.b16 %v697
        %v794 = vunpack.c.l.b16 %v698
        %v795 = vunpack.c.l.b16 %v699
        %v796 = vunpack.c.l.b16 %v700
        %v797 = vunpack.c.l.b16 %v701
        %v798 = vunpack.c.l.b16 %v702
        %v799 = vunpack.c.l.b16 %v703
        %v800 = vunpack.c.l.b16 %v704
        %v801 = vunpack.c.l.b16 %v705
        %v802 = vunpack.c.l.b16 %v706
        %v803 = vunpack.c.l.b16 %v707
        %v804 = vunpack.c.l.b16 %v708
        %v805 = vunpack.c.l.b16 %v709
        %v806 = vunpack.c.l.b16 %v710
        %v807 = vunpack.c.l.b16 %v711
        %v808 = vunpack.c.l.b16 %v712
        %v809 = vunpack.c.l.b16 %v713
        %v810 = vunpack.c.l.b16 %v714
        %v811 = vunpack.c.l.b16 %v715
        %v812 = vunpack.c.l.b16 %v716
        %v813 = vunpack.c.l.b16 %v717
        %v814 = vunpack.c.l.b16 %v718
        %v815 = vunpack.c.l.b16 %v719
        %v816 = vunpack.c.l.b16 %v720
        %v817 = vunpack.c.l.b16 %v721
        %v818 = vunpack.c.l.b16 %v722
        %v819 = vunpack.c.l.b16 %v723
        %v820 = vpack.c.b16 %v773, %v772
        %v821 = vpack.c.b16 %v775, %v774
        %v822 = vpack.c.b16 %v777, %v776
        %v823 = vpack.c.b16 %v779, %v778
        %v824 = vpack.c.b16 %v781, %v780
        %v825 = vpack.c.b16 %v783, %v782
        %v826 = vpack.c.b16 %v785, %v784
        %v827 = vpack.c.b16 %v787, %v786
        %v828 = vpack.c.b16 %v789, %v788
        %v829 = vpack.c.b16 %v791, %v790
        %v830 = vpack.c.b16 %v793, %v792
        %v831 = vpack.c.b16 %v795, %v794
        %v832 = vpack.c.b16 %v797, %v796
        %v833 = vpack.c.b16 %v799, %v798
        %v834 = vpack.c.b16 %v801, %v800
        %v835 = vpack.c.b16 %v803, %v802
        %v836 = vpack.c.b16 %v805, %v804
        %v837 = vpack.c.b16 %v807, %v806
        %v838 = vpack.c.b16 %v809, %v808
        %v839 = vpack.c.b16 %v811, %v810
        %v840 = vpack.c.b16 %v813, %v812
        %v841 = vpack.c.b16 %v815, %v814
        %v842 = vpack.c.b16 %v817, %v816
        %v843 = vpack.c.b16 %v819, %v818
        %868 = vmatprep.subr.bf16.mxu0 0
        %869 = vmatpush1.bf16.msra.mxu0 %v827
        %870 = vmatprep.subr.bf16.mxu0 0
        %871 = vmatpush1.bf16.msra.mxu0 %v826
        %872 = vmatprep.subr.bf16.mxu0 0
        %873 = vmatpush1.bf16.msra.mxu0 %v825
        %874 = vmatprep.subr.bf16.mxu0 0
        %875 = vmatpush1.bf16.msra.mxu0 %v824
        %876 = vmatprep.subr.bf16.mxu0 0
        %877 = vmatpush1.bf16.msra.mxu0 %v823
        %878 = vmatprep.subr.bf16.mxu0 0
        %879 = vmatpush1.bf16.msra.mxu0 %v822
        %880 = vmatprep.subr.bf16.mxu0 0
        %881 = vmatpush1.bf16.msra.mxu0 %v821
        %882 = vmatprep.subr.bf16.mxu0 0
        %883 = vmatpush1.bf16.msra.mxu0 %v820
        %884 = vmatprep.subr.bf16.mxu0 0
        %885 = vmatpush2.bf16.msra.mxu0 %v835
        %886 = vmatprep.subr.bf16.mxu0 0
        %887 = vmatpush2.bf16.msra.mxu0 %v834
        %888 = vmatprep.subr.bf16.mxu0 0
        %889 = vmatpush2.bf16.msra.mxu0 %v833
        %890 = vmatprep.subr.bf16.mxu0 0
        %891 = vmatpush2.bf16.msra.mxu0 %v832
        %892 = vmatprep.subr.bf16.mxu0 0
        %893 = vmatpush2.bf16.msra.mxu0 %v831
        %894 = vmatprep.subr.bf16.mxu0 0
        %895 = vmatpush2.bf16.msra.mxu0 %v830
        %896 = vmatprep.subr.bf16.mxu0 0
        %897 = vmatpush2.bf16.msra.mxu0 %v829
        %898 = vmatprep.subr.bf16.mxu0 0
        %899 = vmatpush2.bf16.msra.mxu0 %v828
        %900 = vmatprep.mubr.bf16.mxu0 %v665
        %901 = vmatmul.mubr.bf16.gmra.mxu0 %v664
        %v902 = vpop.f32.mrf.mxu0
        %v903 = vadd.f32 0.0, %v902
        %v904 = vpop.f32.mrf.mxu0
        %v905 = vpop.f32.mrf.mxu0
        %v906 = vadd.f32 0.0, %v905
        %v907 = vpop.f32.mrf.mxu0
        %908 = vmatprep.mubr.bf16.mxu0 %v668
        %909 = vmatmul.mubr.bf16.gmra.mxu0 %v667
        %v910 = vpop.f32.mrf.mxu0
        %v911 = vadd.f32 0.0, %v910
        %v912 = vpop.f32.mrf.mxu0
        %v913 = vpop.f32.mrf.mxu0
        %v914 = vadd.f32 0.0, %v913
        %v915 = vpop.f32.mrf.mxu0
        %916 = vmatprep.mubr.bf16.mxu0 %v671
        %917 = vmatmul.mubr.bf16.gmra.mxu0 %v670
        %v918 = vpop.f32.mrf.mxu0
        %v919 = vadd.f32 0.0, %v918
        %v920 = vpop.f32.mrf.mxu0
        %v921 = vpop.f32.mrf.mxu0
        %v922 = vadd.f32 0.0, %v921
        %v923 = vpop.f32.mrf.mxu0
        %924 = vmatprep.mubr.bf16.mxu0 %v674
        %925 = vmatmul.mubr.bf16.gmra.mxu0 %v673
        %v926 = vpop.f32.mrf.mxu0
        %v927 = vadd.f32 0.0, %v926
        %v928 = vpop.f32.mrf.mxu0
        %v929 = vpop.f32.mrf.mxu0
        %v930 = vadd.f32 0.0, %v929
        %v931 = vpop.f32.mrf.mxu0
        %932 = vdwg.mxu0
        %933 = vmatprep.subr.bf16.mxu0 0
        %934 = vmatpush1.bf16.msra.mxu0 %v843
        %935 = vmatprep.subr.bf16.mxu0 0
        %936 = vmatpush1.bf16.msra.mxu0 %v842
        %937 = vmatprep.subr.bf16.mxu0 0
        %938 = vmatpush1.bf16.msra.mxu0 %v841
        %939 = vmatprep.subr.bf16.mxu0 0
        %940 = vmatpush1.bf16.msra.mxu0 %v840
        %941 = vmatprep.subr.bf16.mxu0 0
        %942 = vmatpush1.bf16.msra.mxu0 %v839
        %943 = vmatprep.subr.bf16.mxu0 0
        %944 = vmatpush1.bf16.msra.mxu0 %v838
        %945 = vmatprep.subr.bf16.mxu0 0
        %946 = vmatpush1.bf16.msra.mxu0 %v837
        %947 = vmatprep.subr.bf16.mxu0 0
        %948 = vmatpush1.bf16.msra.mxu0 %v836
        %949 = vmatprep.subr.bf16.mxu0 0
        %950 = vmatpush2.bf16.msra.mxu0 0
        %951 = vmatprep.subr.bf16.mxu0 0
        %952 = vmatpush2.bf16.msra.mxu0 0
        %953 = vmatprep.subr.bf16.mxu0 0
        %954 = vmatpush2.bf16.msra.mxu0 0
        %955 = vmatprep.subr.bf16.mxu0 0
        %956 = vmatpush2.bf16.msra.mxu0 0
        %957 = vmatprep.subr.bf16.mxu0 0
        %958 = vmatpush2.bf16.msra.mxu0 0
        %959 = vmatprep.subr.bf16.mxu0 0
        %960 = vmatpush2.bf16.msra.mxu0 0
        %961 = vmatprep.subr.bf16.mxu0 0
        %962 = vmatpush2.bf16.msra.mxu0 0
        %963 = vmatprep.subr.bf16.mxu0 0
        %964 = vmatpush2.bf16.msra.mxu0 0
        %965 = vmatprep.mubr.bf16.mxu0 0
        %966 = vmatmul.mubr.bf16.gmra.mxu0 %v666
        %v967 = vpop.f32.mrf.mxu0
        %v968 = vadd.f32 %v903, %v967
        %v969 = vpop.f32.mrf.mxu0
        %v970 = vpop.f32.mrf.mxu0
        %v971 = vadd.f32 %v906, %v970
        %v972 = vpop.f32.mrf.mxu0
        %973 = vmatprep.mubr.bf16.mxu0 0
        %974 = vmatmul.mubr.bf16.gmra.mxu0 %v669
        %v975 = vpop.f32.mrf.mxu0
        %v976 = vadd.f32 %v911, %v975
        %v977 = vpop.f32.mrf.mxu0
        %v978 = vpop.f32.mrf.mxu0
        %v979 = vadd.f32 %v914, %v978
        %v980 = vpop.f32.mrf.mxu0
        %981 = vmatprep.mubr.bf16.mxu0 0
        %982 = vmatmul.mubr.bf16.gmra.mxu0 %v672
        %v983 = vpop.f32.mrf.mxu0
        %v984 = vadd.f32 %v919, %v983
        %v985 = vpop.f32.mrf.mxu0
        %v986 = vpop.f32.mrf.mxu0
        %v987 = vadd.f32 %v922, %v986
        %v988 = vpop.f32.mrf.mxu0
        %989 = vmatprep.mubr.bf16.mxu0 0
        %990 = vmatmul.mubr.bf16.gmra.mxu0 %v675
        %v991 = vpop.f32.mrf.mxu0
        %v992 = vadd.f32 %v927, %v991
        %v993 = vpop.f32.mrf.mxu0
        %v994 = vpop.f32.mrf.mxu0
        %v995 = vadd.f32 %v930, %v994
        %v996 = vpop.f32.mrf.mxu0
        %997 = vdwg.mxu0
        %v998 = vld [vmem:[%s2] sm:$0xff]
        %v999 = vld [vmem:[%s2 + $0x8] sm:$0xff]
        %v1000 = vld [vmem:[%s2 + $0x10] sm:$0xff]
        %v1001 = vld [vmem:[%s2 + $0x18] sm:$0xff]
        %v1002 = vld [vmem:[%s2 + $0x20] sm:$0xff]
        %v1003 = vld [vmem:[%s2 + $0x28] sm:$0xff]
        %v1004 = vld [vmem:[%s2 + $0x30] sm:$0xff]
        %v1005 = vld [vmem:[%s2 + $0x38] sm:$0xff]
        %vm1006 = vcmask 523264
        %v1008 = vsel %vm1006, %v968, 0
        %v1011 = vsel %vm1006, %v971, 0
        %v1014 = vsel %vm1006, %v976, 0
        %v1017 = vsel %vm1006, %v979, 0
        %v1020 = vsel %vm1006, %v984, 0
        %v1023 = vsel %vm1006, %v987, 0
        %v1026 = vsel %vm1006, %v992, 0
        %v1029 = vsel %vm1006, %v995, 0
        %1031 = vmatprep.subr.mxu0 0.0
        %1032 = vmatpush1.msra.mxu0 0.0
        %1033 = vmatprep.subr.mxu0 0.0
        %1034 = vmatpush1.msra.mxu0 0.0
        %1035 = vmatprep.subr.mxu0 0.0
        %1036 = vmatpush1.msra.mxu0 0.0
        %1037 = vmatprep.subr.mxu0 0.0
        %1038 = vmatpush1.msra.mxu0 0.0
        %1039 = vmatprep.subr.mxu0 0.0
        %1040 = vmatpush1.msra.mxu0 0.0
        %1041 = vmatprep.subr.mxu0 0.0
        %1042 = vmatpush1.msra.mxu0 0.0
        %1043 = vmatprep.subr.mxu0 0.0
        %1044 = vmatpush1.msra.mxu0 0.0
        %1045 = vmatprep.subr.mxu0 0.0
        %1046 = vmatpush1.msra.mxu0 0.0
        %1047 = vmatprep.subr.mxu0 0.0
        %1048 = vmatpush1.msra.mxu0 %v1005
        %1049 = vmatprep.subr.mxu0 0.0
        %1050 = vmatpush1.msra.mxu0 %v1004
        %1051 = vmatprep.subr.mxu0 0.0
        %1052 = vmatpush1.msra.mxu0 %v1003
        %1053 = vmatprep.subr.mxu0 0.0
        %1054 = vmatpush1.msra.mxu0 %v1002
        %1055 = vmatprep.subr.mxu0 0.0
        %1056 = vmatpush1.msra.mxu0 %v1001
        %1057 = vmatprep.subr.mxu0 0.0
        %1058 = vmatpush1.msra.mxu0 %v1000
        %1059 = vmatprep.subr.mxu0 0.0
        %1060 = vmatpush1.msra.mxu0 %v999
        %1061 = vmatprep.subr.mxu0 0.0
        %1062 = vmatpush1.msra.mxu0 %v998
        %1063 = vmatprep.subr.mxu0 0.0
        %1064 = vmatpush2.msra.mxu0 0.0
        %1065 = vmatprep.subr.mxu0 0.0
        %1066 = vmatpush2.msra.mxu0 0.0
        %1067 = vmatprep.subr.mxu0 0.0
        %1068 = vmatpush2.msra.mxu0 0.0
        %1069 = vmatprep.subr.mxu0 0.0
        %1070 = vmatpush2.msra.mxu0 0.0
        %1071 = vmatprep.subr.mxu0 0.0
        %1072 = vmatpush2.msra.mxu0 0.0
        %1073 = vmatprep.subr.mxu0 0.0
        %1074 = vmatpush2.msra.mxu0 0.0
        %1075 = vmatprep.subr.mxu0 0.0
        %1076 = vmatpush2.msra.mxu0 0.0
        %1077 = vmatprep.subr.mxu0 0.0
        %1078 = vmatpush2.msra.mxu0 0.0
        %1079 = vmatprep.subr.mxu0 0.0
        %1080 = vmatpush2.msra.mxu0 0.0
        %1081 = vmatprep.subr.mxu0 0.0
        %1082 = vmatpush2.msra.mxu0 0.0
        %1083 = vmatprep.subr.mxu0 0.0
        %1084 = vmatpush2.msra.mxu0 0.0
        %1085 = vmatprep.subr.mxu0 0.0
        %1086 = vmatpush2.msra.mxu0 0.0
        %1087 = vmatprep.subr.mxu0 0.0
        %1088 = vmatpush2.msra.mxu0 0.0
        %1089 = vmatprep.subr.mxu0 0.0
        %1090 = vmatpush2.msra.mxu0 0.0
        %1091 = vmatprep.subr.mxu0 0.0
        %1092 = vmatpush2.msra.mxu0 0.0
        %1093 = vmatprep.subr.mxu0 0.0
        %1094 = vmatpush2.msra.mxu0 0.0
        %1095 = vmatprep.mubr.f32.mxu0 0.0
        %1096 = vmatmul.mubr.f32.gmra.mxu0 %v1008
        %v1097 = vpop.f32.mrf.mxu0
        %v1098 = vadd.f32 0.0, %v1097
        %v1099 = vpop.f32.mrf.mxu0
        %1100 = vmatprep.mubr.f32.mxu0 0.0
        %1101 = vmatmul.mubr.f32.gmra.mxu0 %v1011
        %v1102 = vpop.f32.mrf.mxu0
        %v1103 = vadd.f32 0.0, %v1102
        %v1104 = vpop.f32.mrf.mxu0
        %1105 = vmatprep.mubr.f32.mxu0 0.0
        %1106 = vmatmul.mubr.f32.gmra.mxu0 %v1014
        %v1107 = vpop.f32.mrf.mxu0
        %v1108 = vadd.f32 0.0, %v1107
        %v1109 = vpop.f32.mrf.mxu0
        %1110 = vmatprep.mubr.f32.mxu0 0.0
        %1111 = vmatmul.mubr.f32.gmra.mxu0 %v1017
        %v1112 = vpop.f32.mrf.mxu0
        %v1113 = vadd.f32 0.0, %v1112
        %v1114 = vpop.f32.mrf.mxu0
        %1115 = vmatprep.mubr.f32.mxu0 0.0
        %1116 = vmatmul.mubr.f32.gmra.mxu0 %v1020
        %v1117 = vpop.f32.mrf.mxu0
        %v1118 = vadd.f32 0.0, %v1117
        %v1119 = vpop.f32.mrf.mxu0
        %1120 = vmatprep.mubr.f32.mxu0 0.0
        %1121 = vmatmul.mubr.f32.gmra.mxu0 %v1023
        %v1122 = vpop.f32.mrf.mxu0
        %v1123 = vadd.f32 0.0, %v1122
        %v1124 = vpop.f32.mrf.mxu0
        %1125 = vmatprep.mubr.f32.mxu0 0.0
        %1126 = vmatmul.mubr.f32.gmra.mxu0 %v1026
        %v1127 = vpop.f32.mrf.mxu0
        %v1128 = vadd.f32 0.0, %v1127
        %v1129 = vpop.f32.mrf.mxu0
        %1130 = vmatprep.mubr.f32.mxu0 0.0
        %1131 = vmatmul.mubr.f32.gmra.mxu0 %v1029
        %v1132 = vpop.f32.mrf.mxu0
        %v1133 = vadd.f32 0.0, %v1132
        %v1134 = vpop.f32.mrf.mxu0
        %1135 = vdwg.mxu0
        %v1136 = vsel %vm1006, %v1098, 0.0
        %v1137 = vsel %vm1006, %v1103, 0.0
        %v1138 = vadd.f32 %v1136, %v1137
        %v1139 = vsel %vm1006, %v1108, 0.0
        %v1140 = vadd.f32 %v1138, %v1139
        %v1141 = vsel %vm1006, %v1113, 0.0
        %v1142 = vadd.f32 %v1140, %v1141
        %v1143 = vsel %vm1006, %v1118, 0.0
        %v1144 = vadd.f32 %v1142, %v1143
        %v1145 = vsel %vm1006, %v1123, 0.0
        %v1146 = vadd.f32 %v1144, %v1145
        %v1147 = vsel %vm1006, %v1128, 0.0
        %v1148 = vadd.f32 %v1146, %v1147
        %v1149 = vsel %vm1006, %v1133, 0.0
        %v1150 = vadd.f32 %v1148, %v1149
        %v1151 = vrot.slane %v1150, 4
        %v1152 = vadd.f32 %v1150, %v1151
        %v1153 = vrot.slane %v1152, 2
        %v1154 = vadd.f32 %v1152, %v1153
        %v1155 = vrot.slane %v1154, 1
        %v1156 = vadd.f32 %v1154, %v1155
        %v1157 = vmul.f32 %v968, %v968
        %v1158 = vmul.f32 %v971, %v971
        %v1159 = vmul.f32 %v976, %v976
        %v1160 = vmul.f32 %v979, %v979
        %v1161 = vmul.f32 %v984, %v984
        %v1162 = vmul.f32 %v987, %v987
        %v1163 = vmul.f32 %v992, %v992
        %v1164 = vmul.f32 %v995, %v995
        %v1166 = vsel %vm1006, %v1157, 0
        %v1169 = vsel %vm1006, %v1158, 0
        %v1172 = vsel %vm1006, %v1159, 0
        %v1175 = vsel %vm1006, %v1160, 0
        %v1178 = vsel %vm1006, %v1161, 0
        %v1181 = vsel %vm1006, %v1162, 0
        %v1184 = vsel %vm1006, %v1163, 0
        %v1187 = vsel %vm1006, %v1164, 0
        %1189 = vmatprep.subr.mxu0 0.0
        %1190 = vmatpush1.msra.mxu0 0.0
        %1191 = vmatprep.subr.mxu0 0.0
        %1192 = vmatpush1.msra.mxu0 0.0
        %1193 = vmatprep.subr.mxu0 0.0
        %1194 = vmatpush1.msra.mxu0 0.0
        %1195 = vmatprep.subr.mxu0 0.0
        %1196 = vmatpush1.msra.mxu0 0.0
        %1197 = vmatprep.subr.mxu0 0.0
        %1198 = vmatpush1.msra.mxu0 0.0
        %1199 = vmatprep.subr.mxu0 0.0
        %1200 = vmatpush1.msra.mxu0 0.0
        %1201 = vmatprep.subr.mxu0 0.0
        %1202 = vmatpush1.msra.mxu0 0.0
        %1203 = vmatprep.subr.mxu0 0.0
        %1204 = vmatpush1.msra.mxu0 0.0
        %1205 = vmatprep.subr.mxu0 0.0
        %1206 = vmatpush1.msra.mxu0 %v1005
        %1207 = vmatprep.subr.mxu0 0.0
        %1208 = vmatpush1.msra.mxu0 %v1004
        %1209 = vmatprep.subr.mxu0 0.0
        %1210 = vmatpush1.msra.mxu0 %v1003
        %1211 = vmatprep.subr.mxu0 0.0
        %1212 = vmatpush1.msra.mxu0 %v1002
        %1213 = vmatprep.subr.mxu0 0.0
        %1214 = vmatpush1.msra.mxu0 %v1001
        %1215 = vmatprep.subr.mxu0 0.0
        %1216 = vmatpush1.msra.mxu0 %v1000
        %1217 = vmatprep.subr.mxu0 0.0
        %1218 = vmatpush1.msra.mxu0 %v999
        %1219 = vmatprep.subr.mxu0 0.0
        %1220 = vmatpush1.msra.mxu0 %v998
        %1221 = vmatprep.subr.mxu0 0.0
        %1222 = vmatpush2.msra.mxu0 0.0
        %1223 = vmatprep.subr.mxu0 0.0
        %1224 = vmatpush2.msra.mxu0 0.0
        %1225 = vmatprep.subr.mxu0 0.0
        %1226 = vmatpush2.msra.mxu0 0.0
        %1227 = vmatprep.subr.mxu0 0.0
        %1228 = vmatpush2.msra.mxu0 0.0
        %1229 = vmatprep.subr.mxu0 0.0
        %1230 = vmatpush2.msra.mxu0 0.0
        %1231 = vmatprep.subr.mxu0 0.0
        %1232 = vmatpush2.msra.mxu0 0.0
        %1233 = vmatprep.subr.mxu0 0.0
        %1234 = vmatpush2.msra.mxu0 0.0
        %1235 = vmatprep.subr.mxu0 0.0
        %1236 = vmatpush2.msra.mxu0 0.0
        %1237 = vmatprep.subr.mxu0 0.0
        %1238 = vmatpush2.msra.mxu0 0.0
        %1239 = vmatprep.subr.mxu0 0.0
        %1240 = vmatpush2.msra.mxu0 0.0
        %1241 = vmatprep.subr.mxu0 0.0
        %1242 = vmatpush2.msra.mxu0 0.0
        %1243 = vmatprep.subr.mxu0 0.0
        %1244 = vmatpush2.msra.mxu0 0.0
        %1245 = vmatprep.subr.mxu0 0.0
        %1246 = vmatpush2.msra.mxu0 0.0
        %1247 = vmatprep.subr.mxu0 0.0
        %1248 = vmatpush2.msra.mxu0 0.0
        %1249 = vmatprep.subr.mxu0 0.0
        %1250 = vmatpush2.msra.mxu0 0.0
        %1251 = vmatprep.subr.mxu0 0.0
        %1252 = vmatpush2.msra.mxu0 0.0
        %1253 = vmatprep.mubr.f32.mxu0 0.0
        %1254 = vmatmul.mubr.f32.gmra.mxu0 %v1166
        %v1255 = vpop.f32.mrf.mxu0
        %v1256 = vadd.f32 0.0, %v1255
        %v1257 = vpop.f32.mrf.mxu0
        %1258 = vmatprep.mubr.f32.mxu0 0.0
        %1259 = vmatmul.mubr.f32.gmra.mxu0 %v1169
        %v1260 = vpop.f32.mrf.mxu0
        %v1261 = vadd.f32 0.0, %v1260
        %v1262 = vpop.f32.mrf.mxu0
        %1263 = vmatprep.mubr.f32.mxu0 0.0
        %1264 = vmatmul.mubr.f32.gmra.mxu0 %v1172
        %v1265 = vpop.f32.mrf.mxu0
        %v1266 = vadd.f32 0.0, %v1265
        %v1267 = vpop.f32.mrf.mxu0
        %1268 = vmatprep.mubr.f32.mxu0 0.0
        %1269 = vmatmul.mubr.f32.gmra.mxu0 %v1175
        %v1270 = vpop.f32.mrf.mxu0
        %v1271 = vadd.f32 0.0, %v1270
        %v1272 = vpop.f32.mrf.mxu0
        %1273 = vmatprep.mubr.f32.mxu0 0.0
        %1274 = vmatmul.mubr.f32.gmra.mxu0 %v1178
        %v1275 = vpop.f32.mrf.mxu0
        %v1276 = vadd.f32 0.0, %v1275
        %v1277 = vpop.f32.mrf.mxu0
        %1278 = vmatprep.mubr.f32.mxu0 0.0
        %1279 = vmatmul.mubr.f32.gmra.mxu0 %v1181
        %v1280 = vpop.f32.mrf.mxu0
        %v1281 = vadd.f32 0.0, %v1280
        %v1282 = vpop.f32.mrf.mxu0
        %1283 = vmatprep.mubr.f32.mxu0 0.0
        %1284 = vmatmul.mubr.f32.gmra.mxu0 %v1184
        %v1285 = vpop.f32.mrf.mxu0
        %v1286 = vadd.f32 0.0, %v1285
        %v1287 = vpop.f32.mrf.mxu0
        %1288 = vmatprep.mubr.f32.mxu0 0.0
        %1289 = vmatmul.mubr.f32.gmra.mxu0 %v1187
        %v1290 = vpop.f32.mrf.mxu0
        %v1291 = vadd.f32 0.0, %v1290
        %v1292 = vpop.f32.mrf.mxu0
        %1293 = vdwg.mxu0
        %v1294 = vsel %vm1006, %v1256, 0.0
        %v1295 = vsel %vm1006, %v1261, 0.0
        %v1296 = vadd.f32 %v1294, %v1295
        %v1297 = vsel %vm1006, %v1266, 0.0
        %v1298 = vadd.f32 %v1296, %v1297
        %v1299 = vsel %vm1006, %v1271, 0.0
        %v1300 = vadd.f32 %v1298, %v1299
        %v1301 = vsel %vm1006, %v1276, 0.0
        %v1302 = vadd.f32 %v1300, %v1301
        %v1303 = vsel %vm1006, %v1281, 0.0
        %v1304 = vadd.f32 %v1302, %v1303
        %v1305 = vsel %vm1006, %v1286, 0.0
        %v1306 = vadd.f32 %v1304, %v1305
        %v1307 = vsel %vm1006, %v1291, 0.0
        %v1308 = vadd.f32 %v1306, %v1307
        %v1309 = vrot.slane %v1308, 4
        %v1310 = vadd.f32 %v1308, %v1309
        %v1311 = vrot.slane %v1310, 2
        %v1312 = vadd.f32 %v1310, %v1311
        %v1313 = vrot.slane %v1312, 1
        %v1314 = vadd.f32 %v1312, %v1313
        %v1315 = vmul.f32 %v1156, 0.001953125
        %v1316 = vmul.f32 %v1314, 0.001953125
        %v1317 = vmul.f32 %v1315, %v1315
        %v1318 = vsub.f32 %v1316, %v1317
        %v1319 = vsub.f32 %v968, %v1315
        %v1320 = vsub.f32 %v971, %v1315
        %v1321 = vsub.f32 %v976, %v1315
        %v1322 = vsub.f32 %v979, %v1315
        %v1323 = vsub.f32 %v984, %v1315
        %v1324 = vsub.f32 %v987, %v1315
        %v1325 = vsub.f32 %v992, %v1315
        %v1326 = vsub.f32 %v995, %v1315
        %v1327 = vadd.f32 %v1318, 1e-05
        %v1328 = vrsqrt.pop %v1327
        %v1329 = vmul.f32 %v1319, %v1328
        %v1330 = vmul.f32 %v1320, %v1328
        %v1331 = vmul.f32 %v1321, %v1328
        %v1332 = vmul.f32 %v1322, %v1328
        %v1333 = vmul.f32 %v1323, %v1328
        %v1334 = vmul.f32 %v1324, %v1328
        %v1335 = vmul.f32 %v1325, %v1328
        %v1336 = vmul.f32 %v1326, %v1328
        %vm1337 = vcmp.ge.f32.partialorder %v1329, 0.0
        %vm1338 = vcmp.ge.f32.partialorder %v1330, 0.0
        %vm1339 = vcmp.ge.f32.partialorder %v1331, 0.0
        %vm1340 = vcmp.ge.f32.partialorder %v1332, 0.0
        %vm1341 = vcmp.ge.f32.partialorder %v1333, 0.0
        %vm1342 = vcmp.ge.f32.partialorder %v1334, 0.0
        %vm1343 = vcmp.ge.f32.partialorder %v1335, 0.0
        %vm1344 = vcmp.ge.f32.partialorder %v1336, 0.0
        %v1345 = vmul.f32 %v1329, 0.01
        %v1346 = vmul.f32 %v1330, 0.01
        %v1347 = vmul.f32 %v1331, 0.01
        %v1348 = vmul.f32 %v1332, 0.01
        %v1349 = vmul.f32 %v1333, 0.01
        %v1350 = vmul.f32 %v1334, 0.01
        %v1351 = vmul.f32 %v1335, 0.01
        %v1352 = vmul.f32 %v1336, 0.01
        %v1353 = vsel %vm1337, %v1329, %v1345
        %v1354 = vsel %vm1338, %v1330, %v1346
        %v1355 = vsel %vm1339, %v1331, %v1347
        %v1356 = vsel %vm1340, %v1332, %v1348
        %v1357 = vsel %vm1341, %v1333, %v1349
        %v1358 = vsel %vm1342, %v1334, %v1350
        %v1359 = vsel %vm1343, %v1335, %v1351
        %v1360 = vsel %vm1344, %v1336, %v1352
        %1361 = vst.msk [vmem:[%s163] sm:$0xff] %vm1006, %v1353
        %1362 = vst.msk [vmem:[%s163 + $0x8] sm:$0xff] %vm1006, %v1354
        %1363 = vst.msk [vmem:[%s163 + $0x10] sm:$0xff] %vm1006, %v1355
        %1364 = vst.msk [vmem:[%s163 + $0x18] sm:$0xff] %vm1006, %v1356
        %1365 = vst.msk [vmem:[%s163 + $0x20] sm:$0xff] %vm1006, %v1357
        %1366 = vst.msk [vmem:[%s163 + $0x28] sm:$0xff] %vm1006, %v1358
        %1367 = vst.msk [vmem:[%s163 + $0x30] sm:$0xff] %vm1006, %v1359
        %1368 = vst.msk [vmem:[%s163 + $0x38] sm:$0xff] %vm1006, %v1360
        %s1369 = sand.u32 %s93, 1
        %s1370 = scalar_lea.sflag [#allocation4], %s1369
        %s1371 = sand.u32 %s93, 1
        %s1372 = smul.addr %s1371, 64
        %s1373 = scalar_lea.vmem [#allocation3], %s1372
        // Predicated region
        $region33: #{tpu_custom_call.1} parent=31 // pred_check
          %p1374 = pneg %p103
        $region34: #{tpu_custom_call.1} parent=31 // pred_check_branch
          %1376 = sbr.rel (%p1374) target = $region36
        $region35: #{tpu_custom_call.1} parent=31 // pred_region
          %s1378 = ssub.s32 1024, 1024
          %1379 = vsyncadd %s1370, %s1378
          %s1380 = smul.addr %s17, 8
          %s1381 = smul.addr %s1380, 128
          %s1382 = scalar_lea.hbm %s3, %s1381
          %s1383 = sshll.u32 %s1373, 4
          %s1384 = int_to_ptr.vmem [resolvable:$true] %s1383
          %1389 = dma.vmem_to_hbm [thread:$0]  %s1384, 1024, %s1382, %s1370, 128, 128, 8
        $region36: #{tpu_custom_call.1} parent=31 // pred_fallthru
          _
      $region32: #{tpu_custom_call.1} parent=5 // pred_fallthru
        _
      %p1390 = scmp.le.s32.totalorder 2, %s12
      // Predicated region
      $region37: #{tpu_custom_call.1} parent=5 // pred_check
        %p1391 = pneg %p1390
      $region38: #{tpu_custom_call.1} parent=5 // pred_check_branch
        %1393 = sbr.rel (%p1391) target = $region40
      $region39: #{tpu_custom_call.1} parent=5 // pred_region
        %s1394 = ssub.s32 %s12, 2
        // Predicated region
        $region41: #{tpu_custom_call.1} parent=39 // pred_check
          %p1395 = pneg %p109
        $region42: #{tpu_custom_call.1} parent=39 // pred_check_branch
          %1397 = sbr.rel (%p1395) target = $region44
        $region43: #{tpu_custom_call.1} parent=39 // pred_region
          %s1398 = sand.u32 %s94, 1
          %s1399 = scalar_lea.sflag [#allocation4], %s1398
          %s1400 = sand.u32 %s94, 1
          %s1401 = smul.addr %s1400, 64
          %s1402 = scalar_lea.vmem [#allocation3], %s1401
          %1403 = dma.done %s1399, 1024
        $region44: #{tpu_custom_call.1} parent=39 // pred_fallthru
          _
      $region40: #{tpu_custom_call.1} parent=5 // pred_fallthru
        _
    $region6: #{tpu_custom_call.1} parent=1 // loop_footer
      %s16 = sadd.s32 1, %s12
    $region7: #{tpu_custom_call.1} parent=1 // loop_footer_branch
      %11 = sbr.rel target = $region3
    $region8: #{tpu_custom_call.1} parent=1 // loop_exit
      _
    %1404 = vsyncpa [#allocation4], 1
    %s1405 = scalar_lea.sflag [#allocation4], 1
    %1406 = vsyncpa %s1405, 1

</llo_original>
